<compile_context>
chip_gen: v7x
topology: tpu7x:2x2x1
jax: 0.10.0
libtpu: 0.0.40
codegen_flags: <defaults>
</compile_context>

<pallas_src>
import functools

import jax
import jax.numpy as jnp
from jax.experimental import pallas as pl
from jax.experimental.pallas import tpu as pltpu


def _downsample_conv_kernel(p00_ref, p01_ref, p10_ref, p11_ref, w_ref, b_ref, o_ref,
                            *, block_ho, wo, c):
    """One (batch, row-tile) step: conv as 9 shifted matmuls, f32 accumulation.

    p{a}{b}_ref : (HO+1, WO+1, C) bf16 phase sub-image  (padded input at h%2==a, w%2==b)
    w_ref       : (9, C, C)       bf16 weights, tap-major (kh*3+kw, c_in, c_out)
    b_ref       : (1, C)          f32 bias
    o_ref       : (block_ho, WO, C) output tile (NHWC)
    """
    j = pl.program_id(1)
    r0 = j * block_ho                       # first output row of this tile
    phase = ((p00_ref, p01_ref), (p10_ref, p11_ref))

    acc = None
    for kh in range(3):
        dh = kh // 2
        for kw in range(3):
            dw = kw // 2
            # padded-input row 2r+kh == phase[kh%2] row (r + kh//2); same for cols.
            x_tap = phase[kh % 2][kw % 2][pl.ds(r0 + dh, block_ho), dw:dw + wo, :]
            contrib = jnp.dot(x_tap.reshape(block_ho * wo, c),
                              w_ref[kh * 3 + kw],
                              preferred_element_type=jnp.float32)
            acc = contrib if acc is None else acc + contrib

    y = acc + b_ref[...]                    # f32 bias add
    o_ref[...] = y.reshape(block_ho, wo, c).astype(o_ref.dtype)


def downsample_forward(x_nchw, t, weight_oihw, bias, *,
                       block_ho=None, m_target=1024,
                       compute_dtype=jnp.bfloat16):
    """DownSample.forward: stride-2 3x3 conv with pad=1 (the timestep t is ignored)."""
    del t
    n, c, h, w = x_nchw.shape
    pad = 1
    ho = (h + 2 * pad - 3) // 2 + 1
    wo = (w + 2 * pad - 3) // 2 + 1

    # ---- layout glue (single fused XLA pass; ~1x input traffic, no 2.25x im2col) ----
    x_nhwc = jnp.transpose(x_nchw, (0, 2, 3, 1)).astype(compute_dtype)
    hp, wp = 2 * ho + 2, 2 * wo + 2                     # pad so each phase is (HO+1, WO+1)
    xp = jnp.pad(x_nhwc, ((0, 0), (pad, hp - h - pad), (pad, wp - w - pad), (0, 0)))
    p00 = xp[:, 0::2, 0::2, :]                          # (N, HO+1, WO+1, C) each
    p01 = xp[:, 0::2, 1::2, :]
    p10 = xp[:, 1::2, 0::2, :]
    p11 = xp[:, 1::2, 1::2, :]

    # PyTorch weight (O, I, KH, KW) -> (KH, KW, I, O) -> (9, C_in, C_out), bf16.
    w_k = jnp.transpose(weight_oihw, (2, 3, 1, 0)).reshape(9, c, c).astype(compute_dtype)
    b_row = bias.reshape(1, c).astype(jnp.float32)

    # ---- choose the output-row tile: largest divisor of HO with block_ho*WO <= m_target ----
    if block_ho is None:
        block_ho = 1
        for d in range(1, ho + 1):
            if ho % d == 0 and d * wo <= m_target:
                block_ho = d
    if ho % block_ho != 0:
        raise ValueError(f"block_ho={block_ho} must divide HO={ho}")
    n_row_tiles = ho // block_ho

    phase_spec = pl.BlockSpec((None, ho + 1, wo + 1, c), lambda b, j: (b, 0, 0, 0))
    kernel = functools.partial(_downsample_conv_kernel, block_ho=block_ho, wo=wo, c=c)

    flops = 2 * n * ho * wo * 9 * c * c
    bytes_accessed = (4 * n * (ho + 1) * (wo + 1) * c * 2   # bf16 phase images
                      + 9 * c * c * 2 + c * 4               # weights + bias
                      + n * ho * wo * c * 4)                # f32 output

    y_nhwc = pl.pallas_call(
        kernel,
        out_shape=jax.ShapeDtypeStruct((n, ho, wo, c), x_nchw.dtype),
        grid_spec=pltpu.PrefetchScalarGridSpec(
            num_scalar_prefetch=0,
            grid=(n, n_row_tiles),
            in_specs=[phase_spec, phase_spec, phase_spec, phase_spec,
                      pl.BlockSpec((9, c, c), lambda b, j: (0, 0, 0)),
                      pl.BlockSpec((1, c), lambda b, j: (0, 0))],
            out_specs=pl.BlockSpec((None, block_ho, wo, c), lambda b, j: (b, j, 0, 0)),
        ),
        compiler_params=pltpu.CompilerParams(
            dimension_semantics=("parallel", "arbitrary"),
            vmem_limit_bytes=48 * 1024 * 1024),
        cost_estimate=pl.CostEstimate(flops=flops, transcendentals=0,
                                      bytes_accessed=bytes_accessed),
    )(p00, p01, p10, p11, w_k, b_row)

    # NCHW only for PyTorch API parity; drop this transpose for channels-last consumers.
    return jnp.transpose(y_nhwc, (0, 3, 1, 2))


if __name__ == "__main__":
    key = jax.random.PRNGKey(0)
    kx, kwk, kb, kt = jax.random.split(key, 4)

    # C=128: realistic diffusion-UNet DownSample width and lane-dense (full 128-lane vregs),
    # while the tensor stays small (2*128*16*16 elements).
    n, c, h, w = 2, 128, 16, 16
    x = jax.random.normal(kx, (n, c, h, w), jnp.float32)
    t = jax.random.normal(kt, (n,), jnp.float32)      # ignored by DownSample.forward

    # Deterministic Conv2d-style init (uniform within +/- 1/sqrt(fan_in)).
    fan_in = c * 3 * 3
    bound = 1.0 / (fan_in ** 0.5)
    weight = jax.random.uniform(kwk, (c, c, 3, 3), jnp.float32, -bound, bound)
    bias = jax.random.uniform(kb, (c,), jnp.float32, -bound, bound)

    # block_ho=4 -> grid (2 batches, 2 row tiles): exercises the tiled-row path and
    # gives >= 2 parallel grid steps for v7x's dual TensorCores.
    y = downsample_forward(x, t, weight, bias, block_ho=4)
    y = jax.block_until_ready(y)

    # Reference: same bf16-quantized operands, f32 accumulation, highest XLA precision.
    xq = x.astype(jnp.bfloat16).astype(jnp.float32)
    wq = weight.astype(jnp.bfloat16).astype(jnp.float32)
    ref = jax.lax.conv_general_dilated(
        xq, wq, window_strides=(2, 2), padding=((1, 1), (1, 1)),
        dimension_numbers=("NCHW", "OIHW", "NCHW"),
        precision=jax.lax.Precision.HIGHEST) + bias.reshape(1, c, 1, 1)

    assert y.shape == (n, c, h // 2, w // 2), y.shape
    assert jnp.allclose(y, ref, atol=5e-3, rtol=5e-3), float(jnp.max(jnp.abs(y - ref)))
    print("KERNEL_OK")
</pallas_src>

<mosaic_0001>
module attributes {stable_mosaic.version = 11 : i64} {
  func.func @_downsample_conv_kernel(%arg0: i32, %arg1: i32, %arg2: memref<1x9x9x128xbf16, #tpu.memory_space<vmem>>, %arg3: memref<1x9x9x128xbf16, #tpu.memory_space<vmem>>, %arg4: memref<1x9x9x128xbf16, #tpu.memory_space<vmem>>, %arg5: memref<1x9x9x128xbf16, #tpu.memory_space<vmem>>, %arg6: memref<9x128x128xbf16, #tpu.memory_space<vmem>>, %arg7: memref<1x128xf32, #tpu.memory_space<vmem>>, %arg8: memref<1x4x8x128xf32, #tpu.memory_space<vmem>>) attributes {dimension_semantics = [#tpu.dimension_semantics<parallel>, #tpu.dimension_semantics<arbitrary>], iteration_bounds = array<i64: 2, 2>, scalar_prefetch = 0 : i64, scratch_operands = 0 : i64, tpu.core_type = #tpu.core_type<tc>, window_params = [{transform_indices = @transform_0, window_bounds = array<i64: 1, 9, 9, 128>}, {transform_indices = @transform_1, window_bounds = array<i64: 1, 9, 9, 128>}, {transform_indices = @transform_2, window_bounds = array<i64: 1, 9, 9, 128>}, {transform_indices = @transform_3, window_bounds = array<i64: 1, 9, 9, 128>}, {pipeline_mode = #tpu.pipeline_mode<synchronous>, transform_indices = @transform_4, window_bounds = array<i64: 9, 128, 128>}, {pipeline_mode = #tpu.pipeline_mode<synchronous>, transform_indices = @transform_5, window_bounds = array<i64: 1, 128>}, {transform_indices = @transform_6, window_bounds = array<i64: 1, 4, 8, 128>}]} {
    %c4_i32 = arith.constant 4 : i32
    %0 = arith.muli %arg1, %c4_i32 : i32
    %c0_i32 = arith.constant 0 : i32
    %1 = arith.addi %0, %c0_i32 : i32
    %c0 = arith.constant 0 : index
    %2 = arith.index_cast %1 : i32 to index
    %c0_0 = arith.constant 0 : index
    %c0_1 = arith.constant 0 : index
    %3 = vector.load %arg2[%c0, %2, %c0_0, %c0_1] : memref<1x9x9x128xbf16, #tpu.memory_space<vmem>>, vector<1x4x8x128xbf16>
    %4 = vector.shape_cast %3 : vector<1x4x8x128xbf16> to vector<4x8x128xbf16>
    %5 = vector.shape_cast %4 : vector<4x8x128xbf16> to vector<32x128xbf16>
    %c0_2 = arith.constant 0 : index
    %c0_3 = arith.constant 0 : index
    %c0_4 = arith.constant 0 : index
    %6 = vector.load %arg6[%c0_2, %c0_3, %c0_4] : memref<9x128x128xbf16, #tpu.memory_space<vmem>>, vector<1x128x128xbf16>
    %7 = vector.shape_cast %6 : vector<1x128x128xbf16> to vector<128x128xbf16>
    %cst = arith.constant dense<0.000000e+00> : vector<32x128xf32>
    %8 = tpu.matmul %5, %7, %cst {dimension_numbers = #tpu.dot_dimension_numbers<[1], [0], [0], [1], [0, 0, 1, 1], [], []>} : vector<32x128xbf16>, vector<128x128xbf16>, vector<32x128xf32> -> vector<32x128xf32>
    %c0_i32_5 = arith.constant 0 : i32
    %9 = arith.addi %0, %c0_i32_5 : i32
    %c0_6 = arith.constant 0 : index
    %10 = arith.index_cast %9 : i32 to index
    %c0_7 = arith.constant 0 : index
    %c0_8 = arith.constant 0 : index
    %11 = vector.load %arg3[%c0_6, %10, %c0_7, %c0_8] : memref<1x9x9x128xbf16, #tpu.memory_space<vmem>>, vector<1x4x8x128xbf16>
    %12 = vector.shape_cast %11 : vector<1x4x8x128xbf16> to vector<4x8x128xbf16>
    %13 = vector.shape_cast %12 : vector<4x8x128xbf16> to vector<32x128xbf16>
    %c1 = arith.constant 1 : index
    %c0_9 = arith.constant 0 : index
    %c0_10 = arith.constant 0 : index
    %14 = vector.load %arg6[%c1, %c0_9, %c0_10] : memref<9x128x128xbf16, #tpu.memory_space<vmem>>, vector<1x128x128xbf16>
    %15 = vector.shape_cast %14 : vector<1x128x128xbf16> to vector<128x128xbf16>
    %cst_11 = arith.constant dense<0.000000e+00> : vector<32x128xf32>
    %16 = tpu.matmul %13, %15, %cst_11 {dimension_numbers = #tpu.dot_dimension_numbers<[1], [0], [0], [1], [0, 0, 1, 1], [], []>} : vector<32x128xbf16>, vector<128x128xbf16>, vector<32x128xf32> -> vector<32x128xf32>
    %17 = arith.addf %8, %16 : vector<32x128xf32>
    %c0_i32_12 = arith.constant 0 : i32
    %18 = arith.addi %0, %c0_i32_12 : i32
    %c0_13 = arith.constant 0 : index
    %19 = arith.index_cast %18 : i32 to index
    %c1_14 = arith.constant 1 : index
    %c0_15 = arith.constant 0 : index
    %20 = vector.load %arg2[%c0_13, %19, %c1_14, %c0_15] : memref<1x9x9x128xbf16, #tpu.memory_space<vmem>>, vector<1x4x8x128xbf16>
    %21 = vector.shape_cast %20 : vector<1x4x8x128xbf16> to vector<4x8x128xbf16>
    %22 = vector.shape_cast %21 : vector<4x8x128xbf16> to vector<32x128xbf16>
    %c2 = arith.constant 2 : index
    %c0_16 = arith.constant 0 : index
    %c0_17 = arith.constant 0 : index
    %23 = vector.load %arg6[%c2, %c0_16, %c0_17] : memref<9x128x128xbf16, #tpu.memory_space<vmem>>, vector<1x128x128xbf16>
    %24 = vector.shape_cast %23 : vector<1x128x128xbf16> to vector<128x128xbf16>
    %cst_18 = arith.constant dense<0.000000e+00> : vector<32x128xf32>
    %25 = tpu.matmul %22, %24, %cst_18 {dimension_numbers = #tpu.dot_dimension_numbers<[1], [0], [0], [1], [0, 0, 1, 1], [], []>} : vector<32x128xbf16>, vector<128x128xbf16>, vector<32x128xf32> -> vector<32x128xf32>
    %26 = arith.addf %17, %25 : vector<32x128xf32>
    %c0_i32_19 = arith.constant 0 : i32
    %27 = arith.addi %0, %c0_i32_19 : i32
    %c0_20 = arith.constant 0 : index
    %28 = arith.index_cast %27 : i32 to index
    %c0_21 = arith.constant 0 : index
    %c0_22 = arith.constant 0 : index
    %29 = vector.load %arg4[%c0_20, %28, %c0_21, %c0_22] : memref<1x9x9x128xbf16, #tpu.memory_space<vmem>>, vector<1x4x8x128xbf16>
    %30 = vector.shape_cast %29 : vector<1x4x8x128xbf16> to vector<4x8x128xbf16>
    %31 = vector.shape_cast %30 : vector<4x8x128xbf16> to vector<32x128xbf16>
    %c3 = arith.constant 3 : index
    %c0_23 = arith.constant 0 : index
    %c0_24 = arith.constant 0 : index
    %32 = vector.load %arg6[%c3, %c0_23, %c0_24] : memref<9x128x128xbf16, #tpu.memory_space<vmem>>, vector<1x128x128xbf16>
    %33 = vector.shape_cast %32 : vector<1x128x128xbf16> to vector<128x128xbf16>
    %cst_25 = arith.constant dense<0.000000e+00> : vector<32x128xf32>
    %34 = tpu.matmul %31, %33, %cst_25 {dimension_numbers = #tpu.dot_dimension_numbers<[1], [0], [0], [1], [0, 0, 1, 1], [], []>} : vector<32x128xbf16>, vector<128x128xbf16>, vector<32x128xf32> -> vector<32x128xf32>
    %35 = arith.addf %26, %34 : vector<32x128xf32>
    %c0_i32_26 = arith.constant 0 : i32
    %36 = arith.addi %0, %c0_i32_26 : i32
    %c0_27 = arith.constant 0 : index
    %37 = arith.index_cast %36 : i32 to index
    %c0_28 = arith.constant 0 : index
    %c0_29 = arith.constant 0 : index
    %38 = vector.load %arg5[%c0_27, %37, %c0_28, %c0_29] : memref<1x9x9x128xbf16, #tpu.memory_space<vmem>>, vector<1x4x8x128xbf16>
    %39 = vector.shape_cast %38 : vector<1x4x8x128xbf16> to vector<4x8x128xbf16>
    %40 = vector.shape_cast %39 : vector<4x8x128xbf16> to vector<32x128xbf16>
    %c4 = arith.constant 4 : index
    %c0_30 = arith.constant 0 : index
    %c0_31 = arith.constant 0 : index
    %41 = vector.load %arg6[%c4, %c0_30, %c0_31] : memref<9x128x128xbf16, #tpu.memory_space<vmem>>, vector<1x128x128xbf16>
    %42 = vector.shape_cast %41 : vector<1x128x128xbf16> to vector<128x128xbf16>
    %cst_32 = arith.constant dense<0.000000e+00> : vector<32x128xf32>
    %43 = tpu.matmul %40, %42, %cst_32 {dimension_numbers = #tpu.dot_dimension_numbers<[1], [0], [0], [1], [0, 0, 1, 1], [], []>} : vector<32x128xbf16>, vector<128x128xbf16>, vector<32x128xf32> -> vector<32x128xf32>
    %44 = arith.addf %35, %43 : vector<32x128xf32>
    %c0_i32_33 = arith.constant 0 : i32
    %45 = arith.addi %0, %c0_i32_33 : i32
    %c0_34 = arith.constant 0 : index
    %46 = arith.index_cast %45 : i32 to index
    %c1_35 = arith.constant 1 : index
    %c0_36 = arith.constant 0 : index
    %47 = vector.load %arg4[%c0_34, %46, %c1_35, %c0_36] : memref<1x9x9x128xbf16, #tpu.memory_space<vmem>>, vector<1x4x8x128xbf16>
    %48 = vector.shape_cast %47 : vector<1x4x8x128xbf16> to vector<4x8x128xbf16>
    %49 = vector.shape_cast %48 : vector<4x8x128xbf16> to vector<32x128xbf16>
    %c5 = arith.constant 5 : index
    %c0_37 = arith.constant 0 : index
    %c0_38 = arith.constant 0 : index
    %50 = vector.load %arg6[%c5, %c0_37, %c0_38] : memref<9x128x128xbf16, #tpu.memory_space<vmem>>, vector<1x128x128xbf16>
    %51 = vector.shape_cast %50 : vector<1x128x128xbf16> to vector<128x128xbf16>
    %cst_39 = arith.constant dense<0.000000e+00> : vector<32x128xf32>
    %52 = tpu.matmul %49, %51, %cst_39 {dimension_numbers = #tpu.dot_dimension_numbers<[1], [0], [0], [1], [0, 0, 1, 1], [], []>} : vector<32x128xbf16>, vector<128x128xbf16>, vector<32x128xf32> -> vector<32x128xf32>
    %53 = arith.addf %44, %52 : vector<32x128xf32>
    %c1_i32 = arith.constant 1 : i32
    %54 = arith.addi %0, %c1_i32 : i32
    %c0_40 = arith.constant 0 : index
    %55 = arith.index_cast %54 : i32 to index
    %c0_41 = arith.constant 0 : index
    %c0_42 = arith.constant 0 : index
    %56 = vector.load %arg2[%c0_40, %55, %c0_41, %c0_42] : memref<1x9x9x128xbf16, #tpu.memory_space<vmem>>, vector<1x4x8x128xbf16>
    %57 = vector.shape_cast %56 : vector<1x4x8x128xbf16> to vector<4x8x128xbf16>
    %58 = vector.shape_cast %57 : vector<4x8x128xbf16> to vector<32x128xbf16>
    %c6 = arith.constant 6 : index
    %c0_43 = arith.constant 0 : index
    %c0_44 = arith.constant 0 : index
    %59 = vector.load %arg6[%c6, %c0_43, %c0_44] : memref<9x128x128xbf16, #tpu.memory_space<vmem>>, vector<1x128x128xbf16>
    %60 = vector.shape_cast %59 : vector<1x128x128xbf16> to vector<128x128xbf16>
    %cst_45 = arith.constant dense<0.000000e+00> : vector<32x128xf32>
    %61 = tpu.matmul %58, %60, %cst_45 {dimension_numbers = #tpu.dot_dimension_numbers<[1], [0], [0], [1], [0, 0, 1, 1], [], []>} : vector<32x128xbf16>, vector<128x128xbf16>, vector<32x128xf32> -> vector<32x128xf32>
    %62 = arith.addf %53, %61 : vector<32x128xf32>
    %c1_i32_46 = arith.constant 1 : i32
    %63 = arith.addi %0, %c1_i32_46 : i32
    %c0_47 = arith.constant 0 : index
    %64 = arith.index_cast %63 : i32 to index
    %c0_48 = arith.constant 0 : index
    %c0_49 = arith.constant 0 : index
    %65 = vector.load %arg3[%c0_47, %64, %c0_48, %c0_49] : memref<1x9x9x128xbf16, #tpu.memory_space<vmem>>, vector<1x4x8x128xbf16>
    %66 = vector.shape_cast %65 : vector<1x4x8x128xbf16> to vector<4x8x128xbf16>
    %67 = vector.shape_cast %66 : vector<4x8x128xbf16> to vector<32x128xbf16>
    %c7 = arith.constant 7 : index
    %c0_50 = arith.constant 0 : index
    %c0_51 = arith.constant 0 : index
    %68 = vector.load %arg6[%c7, %c0_50, %c0_51] : memref<9x128x128xbf16, #tpu.memory_space<vmem>>, vector<1x128x128xbf16>
    %69 = vector.shape_cast %68 : vector<1x128x128xbf16> to vector<128x128xbf16>
    %cst_52 = arith.constant dense<0.000000e+00> : vector<32x128xf32>
    %70 = tpu.matmul %67, %69, %cst_52 {dimension_numbers = #tpu.dot_dimension_numbers<[1], [0], [0], [1], [0, 0, 1, 1], [], []>} : vector<32x128xbf16>, vector<128x128xbf16>, vector<32x128xf32> -> vector<32x128xf32>
    %71 = arith.addf %62, %70 : vector<32x128xf32>
    %c1_i32_53 = arith.constant 1 : i32
    %72 = arith.addi %0, %c1_i32_53 : i32
    %c0_54 = arith.constant 0 : index
    %73 = arith.index_cast %72 : i32 to index
    %c1_55 = arith.constant 1 : index
    %c0_56 = arith.constant 0 : index
    %74 = vector.load %arg2[%c0_54, %73, %c1_55, %c0_56] : memref<1x9x9x128xbf16, #tpu.memory_space<vmem>>, vector<1x4x8x128xbf16>
    %75 = vector.shape_cast %74 : vector<1x4x8x128xbf16> to vector<4x8x128xbf16>
    %76 = vector.shape_cast %75 : vector<4x8x128xbf16> to vector<32x128xbf16>
    %c8 = arith.constant 8 : index
    %c0_57 = arith.constant 0 : index
    %c0_58 = arith.constant 0 : index
    %77 = vector.load %arg6[%c8, %c0_57, %c0_58] : memref<9x128x128xbf16, #tpu.memory_space<vmem>>, vector<1x128x128xbf16>
    %78 = vector.shape_cast %77 : vector<1x128x128xbf16> to vector<128x128xbf16>
    %cst_59 = arith.constant dense<0.000000e+00> : vector<32x128xf32>
    %79 = tpu.matmul %76, %78, %cst_59 {dimension_numbers = #tpu.dot_dimension_numbers<[1], [0], [0], [1], [0, 0, 1, 1], [], []>} : vector<32x128xbf16>, vector<128x128xbf16>, vector<32x128xf32> -> vector<32x128xf32>
    %80 = arith.addf %71, %79 : vector<32x128xf32>
    %c0_60 = arith.constant 0 : index
    %c0_61 = arith.constant 0 : index
    %81 = vector.load %arg7[%c0_60, %c0_61] : memref<1x128xf32, #tpu.memory_space<vmem>>, vector<1x128xf32>
    %82 = vector.broadcast %81 : vector<1x128xf32> to vector<32x128xf32>
    %83 = arith.addf %80, %82 : vector<32x128xf32>
    %84 = vector.shape_cast %83 : vector<32x128xf32> to vector<4x8x128xf32>
    %c0_62 = arith.constant 0 : index
    %c0_63 = arith.constant 0 : index
    %c0_64 = arith.constant 0 : index
    %c0_65 = arith.constant 0 : index
    %85 = vector.load %arg8[%c0_62, %c0_63, %c0_64, %c0_65] : memref<1x4x8x128xf32, #tpu.memory_space<vmem>>, vector<1x4x8x128xf32>
    %86 = vector.shape_cast %85 : vector<1x4x8x128xf32> to vector<4x8x128xf32>
    %87 = vector.shape_cast %84 : vector<4x8x128xf32> to vector<1x4x8x128xf32>
    tpu.vector_store %arg8[%c0_62, %c0_63, %c0_64, %c0_65], %87 {strides = array<i32>} : memref<1x4x8x128xf32, #tpu.memory_space<vmem>>, vector<1x4x8x128xf32>,
    return
  }
  func.func @transform_0(%arg0: i32, %arg1: i32) -> (i32, i32, i32, i32) {
    %c0_i32 = arith.constant 0 : i32
    %c0_i32_0 = arith.constant 0 : i32
    %c0_i32_1 = arith.constant 0 : i32
    %c0_i32_2 = arith.constant 0 : i32
    return %arg0, %c0_i32, %c0_i32_0, %c0_i32_1 : i32, i32, i32, i32
  }
  func.func @transform_1(%arg0: i32, %arg1: i32) -> (i32, i32, i32, i32) {
    %c0_i32 = arith.constant 0 : i32
    %c0_i32_0 = arith.constant 0 : i32
    %c0_i32_1 = arith.constant 0 : i32
    %c0_i32_2 = arith.constant 0 : i32
    return %arg0, %c0_i32, %c0_i32_0, %c0_i32_1 : i32, i32, i32, i32
  }
  func.func @transform_2(%arg0: i32, %arg1: i32) -> (i32, i32, i32, i32) {
    %c0_i32 = arith.constant 0 : i32
    %c0_i32_0 = arith.constant 0 : i32
    %c0_i32_1 = arith.constant 0 : i32
    %c0_i32_2 = arith.constant 0 : i32
    return %arg0, %c0_i32, %c0_i32_0, %c0_i32_1 : i32, i32, i32, i32
  }
  func.func @transform_3(%arg0: i32, %arg1: i32) -> (i32, i32, i32, i32) {
    %c0_i32 = arith.constant 0 : i32
    %c0_i32_0 = arith.constant 0 : i32
    %c0_i32_1 = arith.constant 0 : i32
    %c0_i32_2 = arith.constant 0 : i32
    return %arg0, %c0_i32, %c0_i32_0, %c0_i32_1 : i32, i32, i32, i32
  }
  func.func @transform_4(%arg0: i32, %arg1: i32) -> (i32, i32, i32) {
    %c0_i32 = arith.constant 0 : i32
    %c0_i32_0 = arith.constant 0 : i32
    %c0_i32_1 = arith.constant 0 : i32
    %c0_i32_2 = arith.constant 0 : i32
    return %c0_i32, %c0_i32_0, %c0_i32_1 : i32, i32, i32
  }
  func.func @transform_5(%arg0: i32, %arg1: i32) -> (i32, i32) {
    %c0_i32 = arith.constant 0 : i32
    %c0_i32_0 = arith.constant 0 : i32
    %c0_i32_1 = arith.constant 0 : i32
    return %c0_i32, %c0_i32_0 : i32, i32
  }
  func.func @transform_6(%arg0: i32, %arg1: i32) -> (i32, i32, i32, i32) {
    %c0_i32 = arith.constant 0 : i32
    %c0_i32_0 = arith.constant 0 : i32
    %c0_i32_1 = arith.constant 0 : i32
    return %arg0, %arg1, %c0_i32, %c0_i32_0 : i32, i32, i32, i32
  }
}

</mosaic_0001>

<llo_original>
// kernel: tpu_custom_call.1
$region0: #{tpu_custom_call.1}
  #allocation0 [shape = 'u32[]', space=smem, size = 0x4, offset = 0x4, fixed_abs, tag = 'smem constant byte address 0x4 - core index']
  #allocation1 [shape = 'u32[144,128]{1,0:T(1,128)}', space=vmem, size = 0x12000, scoped, tag = 'internal scratch']
  %s0 = inlined_call_operand.vmem [shape: bf16[2,9,9,128], index: 0, kind: input, shape index: {}]
  %s1 = inlined_call_operand.vmem [shape: bf16[2,9,9,128], index: 1, kind: input, shape index: {}]
  %s2 = inlined_call_operand.vmem [shape: bf16[2,9,9,128], index: 2, kind: input, shape index: {}]
  %s3 = inlined_call_operand.vmem [shape: bf16[2,9,9,128], index: 3, kind: input, shape index: {}]
  %s4 = inlined_call_operand.vmem [shape: bf16[9,128,128], index: 4, kind: input, shape index: {}]
  %s5 = inlined_call_operand.vmem [shape: f32[1,128], index: 5, kind: input, shape index: {}]
  %s6 = inlined_call_operand.hbm [shape: f32[2,8,8,128], index: 6, kind: output, shape index: {}]
  %s7 = sld [smem:[#allocation0]]
  $region57: #{tpu_custom_call.1} parent=0
    _
  %s9 = ssub.s32 1, %s7
  %s10 = scalar_select 0, %s9, %s7
  $region1: #{tpu_custom_call.1} parent=0
    #allocation2 [shape = 'u8[32768]{0}', space=vmem, size = 0x8000, scoped, tag = 'output window, operand 0']
    #allocation3 [shape = 's32[2]{0}', space=sflag, size = 0x8, scoped, tag = 'scoped memory for tpu_custom_call.1']
    %11 = vsyncpa [#allocation3], 0
    %s12 = scalar_lea.sflag [#allocation3], 1
    %13 = vsyncpa %s12, 0
    loop: start=0, step=1, limit=6
    $region2: #{tpu_custom_call.1} parent=1 // loop_pre_header
      _
    $region3: #{tpu_custom_call.1} parent=1 // loop_header
      %s15 = sphi 0, %s19
      %p16 = scmp.ge.s32.totalorder %s15, 6
      %s22 = sphi 0, %s34
      %s23 = sphi 0, %s30
      %s24 = sphi 0, %s22
      %s25 = sphi 0, %s23
      %s26 = sphi 0, %s24
      %s27 = sphi 0, %s25
      %s37 = sphi 0, %s39
      %s40 = sphi 0, %s37
      %s41 = sphi 0, %s40
      %s57 = sphi 0, %s41
      %s63 = sphi 0, %s65
      %s66 = sphi 0, %s63
      %s67 = sphi 0, %s66
      %s83 = sphi 0, %s67
      %s89 = sphi 0, %s91
      %s92 = sphi 0, %s89
      %s93 = sphi 0, %s92
      %s109 = sphi 0, %s93
      %s115 = sphi 0, %s117
      %s118 = sphi 0, %s115
      %s119 = sphi 0, %s118
      %s135 = sphi 0, %s119
      %s139 = sphi 0, %s139
      %s141 = sphi 0, %s139
      %s142 = sphi 0, %s141
      %s156 = sphi 0, %s142
      %s160 = sphi 0, %s160
      %s162 = sphi 0, %s160
      %s163 = sphi 0, %s162
      %s177 = sphi 0, %s163
      %s185 = sphi 0, %s187
      %s188 = sphi 0, %s185
      %s189 = sphi 0, %s188
      %s205 = sphi 0, %s189
    $region4: #{tpu_custom_call.1} parent=1 // loop_header_branch
      %18 = sbr.rel (%p16) target = $region8
    $region5: #{tpu_custom_call.1} parent=1 // loop_body
      %s20 = ssub.s32 %s15, 1
      %s21 = ssub.s32 %s15, 2
      %s28 = sadd.s32 1, %s23
      %p29 = scmp.ge.s32.totalorder %s28, 2
      %s30 = scalar_select %p29, 0, %s28
      %s31 = sadd.s32 1, %s22
      %s32 = scalar_select %p29, %s31, %s22
      %p33 = scmp.ge.s32.totalorder %s32, 2
      %s34 = scalar_select %p33, 0, %s32
      %s35 = ssub.s32 %s22, %s34
      %p36 = scmp.eq.s32.totalorder %s35, 0
      %s38 = sadd.s32 %s37, 1
      %s39 = scalar_select %p36, %s37, %s38
      %p42 = pneg %p36
      %p43 = scmp.eq.s32.totalorder %s15, 3
      %p44 = por %p42, %p43
      %p45 = scmp.ne.s32.totalorder %s37, %s40
      %p46 = scmp.eq.s32.totalorder %s15, 0
      %p47 = por %p45, %p46
      %p48 = scmp.ne.s32.totalorder %s37, %s40
      %p49 = scmp.eq.s32.totalorder %s20, 3
      %p50 = por %p48, %p49
      %p51 = scmp.ne.s32.totalorder %s40, %s41
      %p52 = scmp.eq.s32.totalorder %s20, 0
      %p53 = por %p51, %p52
      %p54 = scmp.ne.s32.totalorder %s40, %s41
      %p55 = scmp.eq.s32.totalorder %s21, 3
      %p56 = por %p54, %p55
      %p58 = scmp.ne.s32.totalorder %s41, %s57
      %p59 = scmp.eq.s32.totalorder %s21, 0
      %p60 = por %p58, %p59
      %s61 = ssub.s32 %s22, %s34
      %p62 = scmp.eq.s32.totalorder %s61, 0
      %s64 = sadd.s32 %s63, 1
      %s65 = scalar_select %p62, %s63, %s64
      %p68 = pneg %p62
      %p69 = scmp.eq.s32.totalorder %s15, 3
      %p70 = por %p68, %p69
      %p71 = scmp.ne.s32.totalorder %s63, %s66
      %p72 = scmp.eq.s32.totalorder %s15, 0
      %p73 = por %p71, %p72
      %p74 = scmp.ne.s32.totalorder %s63, %s66
      %p75 = scmp.eq.s32.totalorder %s20, 3
      %p76 = por %p74, %p75
      %p77 = scmp.ne.s32.totalorder %s66, %s67
      %p78 = scmp.eq.s32.totalorder %s20, 0
      %p79 = por %p77, %p78
      %p80 = scmp.ne.s32.totalorder %s66, %s67
      %p81 = scmp.eq.s32.totalorder %s21, 3
      %p82 = por %p80, %p81
      %p84 = scmp.ne.s32.totalorder %s67, %s83
      %p85 = scmp.eq.s32.totalorder %s21, 0
      %p86 = por %p84, %p85
      %s87 = ssub.s32 %s22, %s34
      %p88 = scmp.eq.s32.totalorder %s87, 0
      %s90 = sadd.s32 %s89, 1
      %s91 = scalar_select %p88, %s89, %s90
      %p94 = pneg %p88
      %p95 = scmp.eq.s32.totalorder %s15, 3
      %p96 = por %p94, %p95
      %p97 = scmp.ne.s32.totalorder %s89, %s92
      %p98 = scmp.eq.s32.totalorder %s15, 0
      %p99 = por %p97, %p98
      %p100 = scmp.ne.s32.totalorder %s89, %s92
      %p101 = scmp.eq.s32.totalorder %s20, 3
      %p102 = por %p100, %p101
      %p103 = scmp.ne.s32.totalorder %s92, %s93
      %p104 = scmp.eq.s32.totalorder %s20, 0
      %p105 = por %p103, %p104
      %p106 = scmp.ne.s32.totalorder %s92, %s93
      %p107 = scmp.eq.s32.totalorder %s21, 3
      %p108 = por %p106, %p107
      %p110 = scmp.ne.s32.totalorder %s93, %s109
      %p111 = scmp.eq.s32.totalorder %s21, 0
      %p112 = por %p110, %p111
      %s113 = ssub.s32 %s22, %s34
      %p114 = scmp.eq.s32.totalorder %s113, 0
      %s116 = sadd.s32 %s115, 1
      %s117 = scalar_select %p114, %s115, %s116
      %p120 = pneg %p114
      %p121 = scmp.eq.s32.totalorder %s15, 3
      %p122 = por %p120, %p121
      %p123 = scmp.ne.s32.totalorder %s115, %s118
      %p124 = scmp.eq.s32.totalorder %s15, 0
      %p125 = por %p123, %p124
      %p126 = scmp.ne.s32.totalorder %s115, %s118
      %p127 = scmp.eq.s32.totalorder %s20, 3
      %p128 = por %p126, %p127
      %p129 = scmp.ne.s32.totalorder %s118, %s119
      %p130 = scmp.eq.s32.totalorder %s20, 0
      %p131 = por %p129, %p130
      %p132 = scmp.ne.s32.totalorder %s118, %s119
      %p133 = scmp.eq.s32.totalorder %s21, 3
      %p134 = por %p132, %p133
      %p136 = scmp.ne.s32.totalorder %s119, %s135
      %p137 = scmp.eq.s32.totalorder %s21, 0
      %p138 = por %p136, %p137
      %s140 = sadd.s32 %s139, 1
      %p143 = scmp.eq.s32.totalorder %s15, 3
      %p144 = scmp.ne.s32.totalorder %s139, %s141
      %p145 = scmp.eq.s32.totalorder %s15, 0
      %p146 = por %p144, %p145
      %p147 = scmp.ne.s32.totalorder %s139, %s141
      %p148 = scmp.eq.s32.totalorder %s20, 3
      %p149 = por %p147, %p148
      %p150 = scmp.ne.s32.totalorder %s141, %s142
      %p151 = scmp.eq.s32.totalorder %s20, 0
      %p152 = por %p150, %p151
      %p153 = scmp.ne.s32.totalorder %s141, %s142
      %p154 = scmp.eq.s32.totalorder %s21, 3
      %p155 = por %p153, %p154
      %p157 = scmp.ne.s32.totalorder %s142, %s156
      %p158 = scmp.eq.s32.totalorder %s21, 0
      %p159 = por %p157, %p158
      %s161 = sadd.s32 %s160, 1
      %p164 = scmp.eq.s32.totalorder %s15, 3
      %p165 = scmp.ne.s32.totalorder %s160, %s162
      %p166 = scmp.eq.s32.totalorder %s15, 0
      %p167 = por %p165, %p166
      %p168 = scmp.ne.s32.totalorder %s160, %s162
      %p169 = scmp.eq.s32.totalorder %s20, 3
      %p170 = por %p168, %p169
      %p171 = scmp.ne.s32.totalorder %s162, %s163
      %p172 = scmp.eq.s32.totalorder %s20, 0
      %p173 = por %p171, %p172
      %p174 = scmp.ne.s32.totalorder %s162, %s163
      %p175 = scmp.eq.s32.totalorder %s21, 3
      %p176 = por %p174, %p175
      %p178 = scmp.ne.s32.totalorder %s163, %s177
      %p179 = scmp.eq.s32.totalorder %s21, 0
      %p180 = por %p178, %p179
      %s181 = ssub.s32 %s22, %s34
      %s182 = ssub.s32 %s23, %s30
      %s183 = sor.u32 %s181, %s182
      %p184 = scmp.eq.s32.totalorder %s183, 0
      %s186 = sadd.s32 %s185, 1
      %s187 = scalar_select %p184, %s185, %s186
      %p190 = pneg %p184
      %p191 = scmp.eq.s32.totalorder %s15, 3
      %p192 = por %p190, %p191
      %p193 = scmp.ne.s32.totalorder %s185, %s188
      %p194 = scmp.eq.s32.totalorder %s15, 0
      %p195 = por %p193, %p194
      %p196 = scmp.ne.s32.totalorder %s185, %s188
      %p197 = scmp.eq.s32.totalorder %s20, 3
      %p198 = por %p196, %p197
      %p199 = scmp.ne.s32.totalorder %s188, %s189
      %p200 = scmp.eq.s32.totalorder %s20, 0
      %p201 = por %p199, %p200
      %p202 = scmp.ne.s32.totalorder %s188, %s189
      %p203 = scmp.eq.s32.totalorder %s21, 3
      %p204 = por %p202, %p203
      %p206 = scmp.ne.s32.totalorder %s189, %s205
      %p207 = scmp.eq.s32.totalorder %s21, 0
      %p208 = por %p206, %p207
      %p209 = scmp.le.s32.totalorder 1, %s15
      %p210 = scmp.lt.s32.totalorder %s15, 5
      %p211 = pnand %p209, %p210
      %p212 = pneg %p211
      // Predicated region
      $region9: #{tpu_custom_call.1} parent=5 // pred_check
        _
      $region10: #{tpu_custom_call.1} parent=5 // pred_check_branch
        %214 = sbr.rel (%p211) target = $region12
      $region11: #{tpu_custom_call.1} parent=5 // pred_region
        %s215 = ssub.s32 %s15, 1
        // Predicated region
        $region13: #{tpu_custom_call.1} parent=11 // pred_check
          %p216 = pneg %p152
        $region14: #{tpu_custom_call.1} parent=11 // pred_check_branch
          %218 = sbr.rel (%p216) target = $region16
        $region15: #{tpu_custom_call.1} parent=11 // pred_region
          _
        $region16: #{tpu_custom_call.1} parent=11 // pred_fallthru
          _
        // Predicated region
        $region17: #{tpu_custom_call.1} parent=11 // pred_check
          %p219 = pneg %p173
        $region18: #{tpu_custom_call.1} parent=11 // pred_check_branch
          %221 = sbr.rel (%p219) target = $region20
        $region19: #{tpu_custom_call.1} parent=11 // pred_region
          _
        $region20: #{tpu_custom_call.1} parent=11 // pred_fallthru
          _
      $region12: #{tpu_custom_call.1} parent=5 // pred_fallthru
        _
      %p222 = scmp.lt.s32.totalorder %s15, 4
      // Predicated region
      $region21: #{tpu_custom_call.1} parent=5 // pred_check
        %p223 = pneg %p222
      $region22: #{tpu_custom_call.1} parent=5 // pred_check_branch
        %225 = sbr.rel (%p223) target = $region24
      $region23: #{tpu_custom_call.1} parent=5 // pred_region
        // Predicated region
        $region25: #{tpu_custom_call.1} parent=23 // pred_check
          %p226 = pneg %p47
        $region26: #{tpu_custom_call.1} parent=23 // pred_check_branch
          %228 = sbr.rel (%p226) target = $region28
        $region27: #{tpu_custom_call.1} parent=23 // pred_region
          %p229 = scmp.lt.s32.totalorder %s22, 1
          %s230 = scalar_select %p229, %s22, 1
          %s231 = smul.addr %s230, 18
          %s232 = smul.addr %s231, 4
          %s233 = scalar_lea.vmem %s0, %s232
        $region28: #{tpu_custom_call.1} parent=23 // pred_fallthru
          _
        // Predicated region
        $region29: #{tpu_custom_call.1} parent=23 // pred_check
          %p234 = pneg %p73
        $region30: #{tpu_custom_call.1} parent=23 // pred_check_branch
          %236 = sbr.rel (%p234) target = $region32
        $region31: #{tpu_custom_call.1} parent=23 // pred_region
          %p237 = scmp.lt.s32.totalorder %s22, 1
          %s238 = scalar_select %p237, %s22, 1
          %s239 = smul.addr %s238, 18
          %s240 = smul.addr %s239, 4
          %s241 = scalar_lea.vmem %s1, %s240
        $region32: #{tpu_custom_call.1} parent=23 // pred_fallthru
          _
        // Predicated region
        $region33: #{tpu_custom_call.1} parent=23 // pred_check
          %p242 = pneg %p99
        $region34: #{tpu_custom_call.1} parent=23 // pred_check_branch
          %244 = sbr.rel (%p242) target = $region36
        $region35: #{tpu_custom_call.1} parent=23 // pred_region
          %p245 = scmp.lt.s32.totalorder %s22, 1
          %s246 = scalar_select %p245, %s22, 1
          %s247 = smul.addr %s246, 18
          %s248 = smul.addr %s247, 4
          %s249 = scalar_lea.vmem %s2, %s248
        $region36: #{tpu_custom_call.1} parent=23 // pred_fallthru
          _
        // Predicated region
        $region37: #{tpu_custom_call.1} parent=23 // pred_check
          %p250 = pneg %p125
        $region38: #{tpu_custom_call.1} parent=23 // pred_check_branch
          %252 = sbr.rel (%p250) target = $region40
        $region39: #{tpu_custom_call.1} parent=23 // pred_region
          %p253 = scmp.lt.s32.totalorder %s22, 1
          %s254 = scalar_select %p253, %s22, 1
          %s255 = smul.addr %s254, 18
          %s256 = smul.addr %s255, 4
          %s257 = scalar_lea.vmem %s3, %s256
        $region40: #{tpu_custom_call.1} parent=23 // pred_fallthru
          _
      $region24: #{tpu_custom_call.1} parent=5 // pred_fallthru
        _
      %p258 = scmp.le.s32.totalorder 1, %s15
      %p259 = scmp.lt.s32.totalorder %s15, 5
      %p260 = pnand %p258, %p259
      %p261 = pneg %p260
      // Predicated region
      $region41: #{tpu_custom_call.1} parent=5 // pred_check
        _
      $region42: #{tpu_custom_call.1} parent=5 // pred_check_branch
        %263 = sbr.rel (%p260) target = $region44
      $region43: #{tpu_custom_call.1} parent=5 // pred_region
        %s264 = ssub.s32 %s15, 1
        %p265 = scmp.lt.s32.totalorder %s24, 1
        %s266 = scalar_select %p265, %s24, 1
        %s267 = smul.addr %s266, 18
        %s268 = smul.addr %s267, 4
        %s269 = scalar_lea.vmem %s0, %s268
        %p270 = pneg %p53
        %p271 = pneg %p50
        %p272 = scmp.lt.s32.totalorder %s24, 1
        %s273 = scalar_select %p272, %s24, 1
        %s274 = smul.addr %s273, 18
        %s275 = smul.addr %s274, 4
        %s276 = scalar_lea.vmem %s1, %s275
        %p277 = pneg %p79
        %p278 = pneg %p76
        %p279 = scmp.lt.s32.totalorder %s24, 1
        %s280 = scalar_select %p279, %s24, 1
        %s281 = smul.addr %s280, 18
        %s282 = smul.addr %s281, 4
        %s283 = scalar_lea.vmem %s2, %s282
        %p284 = pneg %p105
        %p285 = pneg %p102
        %p286 = scmp.lt.s32.totalorder %s24, 1
        %s287 = scalar_select %p286, %s24, 1
        %s288 = smul.addr %s287, 18
        %s289 = smul.addr %s288, 4
        %s290 = scalar_lea.vmem %s3, %s289
        %p291 = pneg %p131
        %p292 = pneg %p128
        %p293 = pneg %p152
        %p294 = pneg %p149
        %p295 = pneg %p173
        %p296 = pneg %p170
        %p297 = pneg %p201
        %p298 = pneg %p198
        %s299 = sand.u32 %s188, 1
        %s300 = scalar_lea.sflag [#allocation3], %s299
        %s301 = sand.u32 %s188, 1
        %s302 = smul.addr %s301, 32
        %s303 = scalar_lea.vmem [#allocation2], %s302
        %p304 = scmp.lt.s32.totalorder %s24, 1
        %s305 = scalar_select %p304, %s24, 1
        %s306 = smul.addr %s305, 18
        %s307 = smul.addr %s306, 4
        %s308 = scalar_lea.vmem %s0, %s307
        %p309 = scmp.lt.s32.totalorder %s24, 1
        %s310 = scalar_select %p309, %s24, 1
        %s311 = smul.addr %s310, 18
        %s312 = smul.addr %s311, 4
        %s313 = scalar_lea.vmem %s1, %s312
        %p314 = scmp.lt.s32.totalorder %s24, 1
        %s315 = scalar_select %p314, %s24, 1
        %s316 = smul.addr %s315, 18
        %s317 = smul.addr %s316, 4
        %s318 = scalar_lea.vmem %s2, %s317
        %p319 = scmp.lt.s32.totalorder %s24, 1
        %s320 = scalar_select %p319, %s24, 1
        %s321 = smul.addr %s320, 18
        %s322 = smul.addr %s321, 4
        %s323 = scalar_lea.vmem %s3, %s322
        %s324 = smul.u32 4, %s25
        %s326 = smul.u32 %s25, 4
        %s327 = smul.u32 %s326, 2
        %s328 = smul.addr %s327, 4
        %s329 = scalar_lea.vmem %s308, %s328
        %v330 = vld [vmem:[%s329] sm:$0xf]
        %v331 = vld [vmem:[%s329 + $0x8] sm:$0xf]
        %v332 = vld [vmem:[%s329 + $0x10] sm:$0xf]
        %v333 = vld [vmem:[%s329 + $0x18] sm:$0xf]
        %v334 = vld [vmem:[%s4] sm:$0xf]
        %v335 = vld [vmem:[%s4 + $0x4] sm:$0xf]
        %v336 = vld [vmem:[%s4 + $0x8] sm:$0xf]
        %v337 = vld [vmem:[%s4 + $0xc] sm:$0xf]
        %v338 = vld [vmem:[%s4 + $0x10] sm:$0xf]
        %v339 = vld [vmem:[%s4 + $0x14] sm:$0xf]
        %v340 = vld [vmem:[%s4 + $0x18] sm:$0xf]
        %v341 = vld [vmem:[%s4 + $0x1c] sm:$0xf]
        %v342 = vld [vmem:[%s4 + $0x20] sm:$0xf]
        %v343 = vld [vmem:[%s4 + $0x24] sm:$0xf]
        %v344 = vld [vmem:[%s4 + $0x28] sm:$0xf]
        %v345 = vld [vmem:[%s4 + $0x2c] sm:$0xf]
        %v346 = vld [vmem:[%s4 + $0x30] sm:$0xf]
        %v347 = vld [vmem:[%s4 + $0x34] sm:$0xf]
        %v348 = vld [vmem:[%s4 + $0x38] sm:$0xf]
        %v349 = vld [vmem:[%s4 + $0x3c] sm:$0xf]
        %s350 = smul.addr %s327, 4
        %s351 = scalar_lea.vmem %s313, %s350
        %v352 = vld [vmem:[%s351] sm:$0xf]
        %v353 = vld [vmem:[%s351 + $0x8] sm:$0xf]
        %v354 = vld [vmem:[%s351 + $0x10] sm:$0xf]
        %v355 = vld [vmem:[%s351 + $0x18] sm:$0xf]
        %s356 = scalar_lea.vmem %s4, 64
        %v357 = vld [vmem:[%s356] sm:$0xf]
        %v358 = vld [vmem:[%s356 + $0x4] sm:$0xf]
        %v359 = vld [vmem:[%s356 + $0x8] sm:$0xf]
        %v360 = vld [vmem:[%s356 + $0xc] sm:$0xf]
        %v361 = vld [vmem:[%s356 + $0x10] sm:$0xf]
        %v362 = vld [vmem:[%s356 + $0x14] sm:$0xf]
        %v363 = vld [vmem:[%s356 + $0x18] sm:$0xf]
        %v364 = vld [vmem:[%s356 + $0x1c] sm:$0xf]
        %v365 = vld [vmem:[%s356 + $0x20] sm:$0xf]
        %v366 = vld [vmem:[%s356 + $0x24] sm:$0xf]
        %v367 = vld [vmem:[%s356 + $0x28] sm:$0xf]
        %v368 = vld [vmem:[%s356 + $0x2c] sm:$0xf]
        %v369 = vld [vmem:[%s356 + $0x30] sm:$0xf]
        %v370 = vld [vmem:[%s356 + $0x34] sm:$0xf]
        %v371 = vld [vmem:[%s356 + $0x38] sm:$0xf]
        %v372 = vld [vmem:[%s356 + $0x3c] sm:$0xf]
        %v377 = vunpack.c.l.b16 %v352
        %v378 = vunpack.c.l.b16 %v353
        %v379 = vunpack.c.l.b16 %v354
        %v380 = vunpack.c.l.b16 %v355
        %v381 = vpack.c.b16 %v378, %v377
        %v382 = vpack.c.b16 %v380, %v379
        %v401 = vunpack.c.l.b16 %v357
        %v402 = vunpack.c.l.b16 %v358
        %v403 = vunpack.c.l.b16 %v359
        %v404 = vunpack.c.l.b16 %v360
        %v405 = vunpack.c.l.b16 %v361
        %v406 = vunpack.c.l.b16 %v362
        %v407 = vunpack.c.l.b16 %v363
        %v408 = vunpack.c.l.b16 %v364
        %v409 = vunpack.c.l.b16 %v365
        %v410 = vunpack.c.l.b16 %v366
        %v411 = vunpack.c.l.b16 %v367
        %v412 = vunpack.c.l.b16 %v368
        %v413 = vunpack.c.l.b16 %v369
        %v414 = vunpack.c.l.b16 %v370
        %v415 = vunpack.c.l.b16 %v371
        %v416 = vunpack.c.l.b16 %v372
        %v417 = vpack.c.b16 %v402, %v401
        %v418 = vpack.c.b16 %v404, %v403
        %v419 = vpack.c.b16 %v406, %v405
        %v420 = vpack.c.b16 %v408, %v407
        %v421 = vpack.c.b16 %v410, %v409
        %v422 = vpack.c.b16 %v412, %v411
        %v423 = vpack.c.b16 %v414, %v413
        %v424 = vpack.c.b16 %v416, %v415
        %433 = vmatprep.subr.bf16.mxu0 0
        %434 = vmatpush1.bf16.msra.mxu0 %v417
        %435 = vmatprep.subr.bf16.mxu0 0
        %436 = vmatpush1.bf16.msra.mxu0 %v418
        %437 = vmatprep.subr.bf16.mxu0 0
        %438 = vmatpush1.bf16.msra.mxu0 %v419
        %439 = vmatprep.subr.bf16.mxu0 0
        %440 = vmatpush1.bf16.msra.mxu0 %v420
        %441 = vmatprep.subr.bf16.mxu0 0
        %442 = vmatpush1.bf16.msra.mxu0 %v421
        %443 = vmatprep.subr.bf16.mxu0 0
        %444 = vmatpush1.bf16.msra.mxu0 %v422
        %445 = vmatprep.subr.bf16.mxu0 0
        %446 = vmatpush1.bf16.msra.mxu0 %v423
        %447 = vmatprep.subr.bf16.mxu0 0
        %448 = vmatpush1.bf16.msra.mxu0 %v424
        %449 = vmatprep.subr.bf16.mxu0 0
        %450 = vmatpush1.bf16.msra.mxu0 0
        %451 = vmatprep.subr.bf16.mxu0 0
        %452 = vmatpush1.bf16.msra.mxu0 0
        %453 = vmatprep.subr.bf16.mxu0 0
        %454 = vmatpush1.bf16.msra.mxu0 0
        %455 = vmatprep.subr.bf16.mxu0 0
        %456 = vmatpush1.bf16.msra.mxu0 0
        %457 = vmatprep.subr.bf16.mxu0 0
        %458 = vmatpush1.bf16.msra.mxu0 0
        %459 = vmatprep.subr.bf16.mxu0 0
        %460 = vmatpush1.bf16.msra.mxu0 0
        %461 = vmatprep.subr.bf16.mxu0 0
        %462 = vmatpush1.bf16.msra.mxu0 0
        %463 = vmatprep.subr.bf16.mxu0 0
        %464 = vmatpush1.bf16.msra.mxu0 0
        %465 = vmatprep.mubr.bf16.mxu0 0
        %466 = vmatmul.mubr.bf16.gmra.mrb[0].mxu0 %v381
        %v467 = vpop.f32.mrb[0].mxu0
        %v468 = vadd.f32 0.0, %v467
        %v469 = vpop.f32.mrb[0].mxu0
        %v470 = vpop.f32.mrb[0].mxu0
        %v471 = vadd.f32 0.0, %v470
        %v472 = vpop.f32.mrb[0].mxu0
        %473 = vmatprep.mubr.bf16.mxu0 0
        %474 = vmatmul.mubr.bf16.gmra.mrb[0].mxu0 %v382
        %v475 = vpop.f32.mrb[0].mxu0
        %v476 = vadd.f32 0.0, %v475
        %v477 = vpop.f32.mrb[0].mxu0
        %v478 = vpop.f32.mrb[0].mxu0
        %v479 = vadd.f32 0.0, %v478
        %v480 = vpop.f32.mrb[0].mxu0
        %481 = vdwg.mxu0
        %v486 = vunpack.c.l.b16 %v330
        %v487 = vunpack.c.l.b16 %v331
        %v488 = vunpack.c.l.b16 %v332
        %v489 = vunpack.c.l.b16 %v333
        %v490 = vpack.c.b16 %v487, %v486
        %v491 = vpack.c.b16 %v489, %v488
        %v510 = vunpack.c.l.b16 %v334
        %v511 = vunpack.c.l.b16 %v335
        %v512 = vunpack.c.l.b16 %v336
        %v513 = vunpack.c.l.b16 %v337
        %v514 = vunpack.c.l.b16 %v338
        %v515 = vunpack.c.l.b16 %v339
        %v516 = vunpack.c.l.b16 %v340
        %v517 = vunpack.c.l.b16 %v341
        %v518 = vunpack.c.l.b16 %v342
        %v519 = vunpack.c.l.b16 %v343
        %v520 = vunpack.c.l.b16 %v344
        %v521 = vunpack.c.l.b16 %v345
        %v522 = vunpack.c.l.b16 %v346
        %v523 = vunpack.c.l.b16 %v347
        %v524 = vunpack.c.l.b16 %v348
        %v525 = vunpack.c.l.b16 %v349
        %v526 = vpack.c.b16 %v511, %v510
        %v527 = vpack.c.b16 %v513, %v512
        %v528 = vpack.c.b16 %v515, %v514
        %v529 = vpack.c.b16 %v517, %v516
        %v530 = vpack.c.b16 %v519, %v518
        %v531 = vpack.c.b16 %v521, %v520
        %v532 = vpack.c.b16 %v523, %v522
        %v533 = vpack.c.b16 %v525, %v524
        %542 = vmatprep.subr.bf16.mxu0 0
        %543 = vmatpush1.bf16.msra.mxu0 %v526
        %544 = vmatprep.subr.bf16.mxu0 0
        %545 = vmatpush1.bf16.msra.mxu0 %v527
        %546 = vmatprep.subr.bf16.mxu0 0
        %547 = vmatpush1.bf16.msra.mxu0 %v528
        %548 = vmatprep.subr.bf16.mxu0 0
        %549 = vmatpush1.bf16.msra.mxu0 %v529
        %550 = vmatprep.subr.bf16.mxu0 0
        %551 = vmatpush1.bf16.msra.mxu0 %v530
        %552 = vmatprep.subr.bf16.mxu0 0
        %553 = vmatpush1.bf16.msra.mxu0 %v531
        %554 = vmatprep.subr.bf16.mxu0 0
        %555 = vmatpush1.bf16.msra.mxu0 %v532
        %556 = vmatprep.subr.bf16.mxu0 0
        %557 = vmatpush1.bf16.msra.mxu0 %v533
        %558 = vmatprep.subr.bf16.mxu0 0
        %559 = vmatpush1.bf16.msra.mxu0 0
        %560 = vmatprep.subr.bf16.mxu0 0
        %561 = vmatpush1.bf16.msra.mxu0 0
        %562 = vmatprep.subr.bf16.mxu0 0
        %563 = vmatpush1.bf16.msra.mxu0 0
        %564 = vmatprep.subr.bf16.mxu0 0
        %565 = vmatpush1.bf16.msra.mxu0 0
        %566 = vmatprep.subr.bf16.mxu0 0
        %567 = vmatpush1.bf16.msra.mxu0 0
        %568 = vmatprep.subr.bf16.mxu0 0
        %569 = vmatpush1.bf16.msra.mxu0 0
        %570 = vmatprep.subr.bf16.mxu0 0
        %571 = vmatpush1.bf16.msra.mxu0 0
        %572 = vmatprep.subr.bf16.mxu0 0
        %573 = vmatpush1.bf16.msra.mxu0 0
        %574 = vmatprep.mubr.bf16.mxu0 0
        %575 = vmatmul.mubr.bf16.gmra.mrb[0].mxu0 %v490
        %v576 = vpop.f32.mrb[0].mxu0
        %v577 = vadd.f32 %v468, %v576
        %v578 = vpop.f32.mrb[0].mxu0
        %v579 = vpop.f32.mrb[0].mxu0
        %v580 = vadd.f32 %v471, %v579
        %v581 = vpop.f32.mrb[0].mxu0
        %582 = vmatprep.mubr.bf16.mxu0 0
        %583 = vmatmul.mubr.bf16.gmra.mrb[0].mxu0 %v491
        %v584 = vpop.f32.mrb[0].mxu0
        %v585 = vadd.f32 %v476, %v584
        %v586 = vpop.f32.mrb[0].mxu0
        %v587 = vpop.f32.mrb[0].mxu0
        %v588 = vadd.f32 %v479, %v587
        %v589 = vpop.f32.mrb[0].mxu0
        %590 = vdwg.mxu0
        %v591 = vld [vmem:[%s329] sm:$0xf]
        %v592 = vld [vmem:[%s329 + $0x4] sm:$0x1]
        %v593 = vld [vmem:[%s329 + $0x8] sm:$0xf]
        %v594 = vld [vmem:[%s329 + $0xc] sm:$0x1]
        %v595 = vld [vmem:[%s329 + $0x10] sm:$0xf]
        %v596 = vld [vmem:[%s329 + $0x14] sm:$0x1]
        %v597 = vld [vmem:[%s329 + $0x18] sm:$0xf]
        %v598 = vld [vmem:[%s329 + $0x1c] sm:$0x1]
        %vm599 = vsmask.f32 3328
        %vm600 = vsmask.f32 7440
        %vm601 = vmor %vm599, %vm600
        %v603 = vshrl.u32 %v591, 16
        %v605 = vrot.slane %v603, 4
        %v606 = vshll.u32 %v591, 16
        %v608 = vrot.slane %v606, 5
        %v609 = vor.u32 %v605, %v608
        %v610 = vrot.slane %v609, 4
        %v612 = vshll.u32 %v592, 16
        %v614 = vrot.slane %v612, 5
        %v615 = vsel %vm601, %v610, %v614
        %v617 = vshrl.u32 %v593, 16
        %v619 = vrot.slane %v617, 4
        %v620 = vshll.u32 %v593, 16
        %v622 = vrot.slane %v620, 5
        %v623 = vor.u32 %v619, %v622
        %v624 = vrot.slane %v623, 4
        %v626 = vshll.u32 %v594, 16
        %v628 = vrot.slane %v626, 5
        %v629 = vsel %vm601, %v624, %v628
        %v631 = vshrl.u32 %v595, 16
        %v633 = vrot.slane %v631, 4
        %v634 = vshll.u32 %v595, 16
        %v636 = vrot.slane %v634, 5
        %v637 = vor.u32 %v633, %v636
        %v638 = vrot.slane %v637, 4
        %v640 = vshll.u32 %v596, 16
        %v642 = vrot.slane %v640, 5
        %v643 = vsel %vm601, %v638, %v642
        %v645 = vshrl.u32 %v597, 16
        %v647 = vrot.slane %v645, 4
        %v648 = vshll.u32 %v597, 16
        %v650 = vrot.slane %v648, 5
        %v651 = vor.u32 %v647, %v650
        %v652 = vrot.slane %v651, 4
        %v654 = vshll.u32 %v598, 16
        %v656 = vrot.slane %v654, 5
        %v657 = vsel %vm601, %v652, %v656
        %s658 = scalar_lea.vmem %s4, 128
        %v659 = vld [vmem:[%s658] sm:$0xf]
        %v660 = vld [vmem:[%s658 + $0x4] sm:$0xf]
        %v661 = vld [vmem:[%s658 + $0x8] sm:$0xf]
        %v662 = vld [vmem:[%s658 + $0xc] sm:$0xf]
        %v663 = vld [vmem:[%s658 + $0x10] sm:$0xf]
        %v664 = vld [vmem:[%s658 + $0x14] sm:$0xf]
        %v665 = vld [vmem:[%s658 + $0x18] sm:$0xf]
        %v666 = vld [vmem:[%s658 + $0x1c] sm:$0xf]
        %v667 = vld [vmem:[%s658 + $0x20] sm:$0xf]
        %v668 = vld [vmem:[%s658 + $0x24] sm:$0xf]
        %v669 = vld [vmem:[%s658 + $0x28] sm:$0xf]
        %v670 = vld [vmem:[%s658 + $0x2c] sm:$0xf]
        %v671 = vld [vmem:[%s658 + $0x30] sm:$0xf]
        %v672 = vld [vmem:[%s658 + $0x34] sm:$0xf]
        %v673 = vld [vmem:[%s658 + $0x38] sm:$0xf]
        %v674 = vld [vmem:[%s658 + $0x3c] sm:$0xf]
        %v675 = vunpack.c.l.b16 %v615
        %v676 = vunpack.c.l.b16 %v629
        %v677 = vunpack.c.l.b16 %v643
        %v678 = vunpack.c.l.b16 %v657
        %v679 = vpack.c.b16 %v676, %v675
        %v680 = vpack.c.b16 %v678, %v677
        %v699 = vunpack.c.l.b16 %v659
        %v700 = vunpack.c.l.b16 %v660
        %v701 = vunpack.c.l.b16 %v661
        %v702 = vunpack.c.l.b16 %v662
        %v703 = vunpack.c.l.b16 %v663
        %v704 = vunpack.c.l.b16 %v664
        %v705 = vunpack.c.l.b16 %v665
        %v706 = vunpack.c.l.b16 %v666
        %v707 = vunpack.c.l.b16 %v667
        %v708 = vunpack.c.l.b16 %v668
        %v709 = vunpack.c.l.b16 %v669
        %v710 = vunpack.c.l.b16 %v670
        %v711 = vunpack.c.l.b16 %v671
        %v712 = vunpack.c.l.b16 %v672
        %v713 = vunpack.c.l.b16 %v673
        %v714 = vunpack.c.l.b16 %v674
        %v715 = vpack.c.b16 %v700, %v699
        %v716 = vpack.c.b16 %v702, %v701
        %v717 = vpack.c.b16 %v704, %v703
        %v718 = vpack.c.b16 %v706, %v705
        %v719 = vpack.c.b16 %v708, %v707
        %v720 = vpack.c.b16 %v710, %v709
        %v721 = vpack.c.b16 %v712, %v711
        %v722 = vpack.c.b16 %v714, %v713
        %731 = vmatprep.subr.bf16.mxu0 0
        %732 = vmatpush1.bf16.msra.mxu0 %v715
        %733 = vmatprep.subr.bf16.mxu0 0
        %734 = vmatpush1.bf16.msra.mxu0 %v716
        %735 = vmatprep.subr.bf16.mxu0 0
        %736 = vmatpush1.bf16.msra.mxu0 %v717
        %737 = vmatprep.subr.bf16.mxu0 0
        %738 = vmatpush1.bf16.msra.mxu0 %v718
        %739 = vmatprep.subr.bf16.mxu0 0
        %740 = vmatpush1.bf16.msra.mxu0 %v719
        %741 = vmatprep.subr.bf16.mxu0 0
        %742 = vmatpush1.bf16.msra.mxu0 %v720
        %743 = vmatprep.subr.bf16.mxu0 0
        %744 = vmatpush1.bf16.msra.mxu0 %v721
        %745 = vmatprep.subr.bf16.mxu0 0
        %746 = vmatpush1.bf16.msra.mxu0 %v722
        %747 = vmatprep.subr.bf16.mxu0 0
        %748 = vmatpush1.bf16.msra.mxu0 0
        %749 = vmatprep.subr.bf16.mxu0 0
        %750 = vmatpush1.bf16.msra.mxu0 0
        %751 = vmatprep.subr.bf16.mxu0 0
        %752 = vmatpush1.bf16.msra.mxu0 0
        %753 = vmatprep.subr.bf16.mxu0 0
        %754 = vmatpush1.bf16.msra.mxu0 0
        %755 = vmatprep.subr.bf16.mxu0 0
        %756 = vmatpush1.bf16.msra.mxu0 0
        %757 = vmatprep.subr.bf16.mxu0 0
        %758 = vmatpush1.bf16.msra.mxu0 0
        %759 = vmatprep.subr.bf16.mxu0 0
        %760 = vmatpush1.bf16.msra.mxu0 0
        %761 = vmatprep.subr.bf16.mxu0 0
        %762 = vmatpush1.bf16.msra.mxu0 0
        %763 = vmatprep.mubr.bf16.mxu0 0
        %764 = vmatmul.mubr.bf16.gmra.mrb[0].mxu0 %v679
        %v765 = vpop.f32.mrb[0].mxu0
        %v766 = vadd.f32 0.0, %v765
        %v767 = vpop.f32.mrb[0].mxu0
        %v768 = vpop.f32.mrb[0].mxu0
        %v769 = vadd.f32 0.0, %v768
        %v770 = vpop.f32.mrb[0].mxu0
        %771 = vmatprep.mubr.bf16.mxu0 0
        %772 = vmatmul.mubr.bf16.gmra.mrb[0].mxu0 %v680
        %v773 = vpop.f32.mrb[0].mxu0
        %v774 = vadd.f32 0.0, %v773
        %v775 = vpop.f32.mrb[0].mxu0
        %v776 = vpop.f32.mrb[0].mxu0
        %v777 = vadd.f32 0.0, %v776
        %v778 = vpop.f32.mrb[0].mxu0
        %779 = vdwg.mxu0
        %v780 = vadd.f32 %v577, %v766
        %v781 = vadd.f32 %v580, %v769
        %v782 = vadd.f32 %v585, %v774
        %v783 = vadd.f32 %v588, %v777
        %s784 = smul.addr %s327, 4
        %s785 = scalar_lea.vmem %s318, %s784
        %v786 = vld [vmem:[%s785] sm:$0xf]
        %v787 = vld [vmem:[%s785 + $0x8] sm:$0xf]
        %v788 = vld [vmem:[%s785 + $0x10] sm:$0xf]
        %v789 = vld [vmem:[%s785 + $0x18] sm:$0xf]
        %s790 = scalar_lea.vmem %s4, 192
        %v791 = vld [vmem:[%s790] sm:$0xf]
        %v792 = vld [vmem:[%s790 + $0x4] sm:$0xf]
        %v793 = vld [vmem:[%s790 + $0x8] sm:$0xf]
        %v794 = vld [vmem:[%s790 + $0xc] sm:$0xf]
        %v795 = vld [vmem:[%s790 + $0x10] sm:$0xf]
        %v796 = vld [vmem:[%s790 + $0x14] sm:$0xf]
        %v797 = vld [vmem:[%s790 + $0x18] sm:$0xf]
        %v798 = vld [vmem:[%s790 + $0x1c] sm:$0xf]
        %v799 = vld [vmem:[%s790 + $0x20] sm:$0xf]
        %v800 = vld [vmem:[%s790 + $0x24] sm:$0xf]
        %v801 = vld [vmem:[%s790 + $0x28] sm:$0xf]
        %v802 = vld [vmem:[%s790 + $0x2c] sm:$0xf]
        %v803 = vld [vmem:[%s790 + $0x30] sm:$0xf]
        %v804 = vld [vmem:[%s790 + $0x34] sm:$0xf]
        %v805 = vld [vmem:[%s790 + $0x38] sm:$0xf]
        %v806 = vld [vmem:[%s790 + $0x3c] sm:$0xf]
        %v811 = vunpack.c.l.b16 %v786
        %v812 = vunpack.c.l.b16 %v787
        %v813 = vunpack.c.l.b16 %v788
        %v814 = vunpack.c.l.b16 %v789
        %v815 = vpack.c.b16 %v812, %v811
        %v816 = vpack.c.b16 %v814, %v813
        %v835 = vunpack.c.l.b16 %v791
        %v836 = vunpack.c.l.b16 %v792
        %v837 = vunpack.c.l.b16 %v793
        %v838 = vunpack.c.l.b16 %v794
        %v839 = vunpack.c.l.b16 %v795
        %v840 = vunpack.c.l.b16 %v796
        %v841 = vunpack.c.l.b16 %v797
        %v842 = vunpack.c.l.b16 %v798
        %v843 = vunpack.c.l.b16 %v799
        %v844 = vunpack.c.l.b16 %v800
        %v845 = vunpack.c.l.b16 %v801
        %v846 = vunpack.c.l.b16 %v802
        %v847 = vunpack.c.l.b16 %v803
        %v848 = vunpack.c.l.b16 %v804
        %v849 = vunpack.c.l.b16 %v805
        %v850 = vunpack.c.l.b16 %v806
        %v851 = vpack.c.b16 %v836, %v835
        %v852 = vpack.c.b16 %v838, %v837
        %v853 = vpack.c.b16 %v840, %v839
        %v854 = vpack.c.b16 %v842, %v841
        %v855 = vpack.c.b16 %v844, %v843
        %v856 = vpack.c.b16 %v846, %v845
        %v857 = vpack.c.b16 %v848, %v847
        %v858 = vpack.c.b16 %v850, %v849
        %867 = vmatprep.subr.bf16.mxu0 0
        %868 = vmatpush1.bf16.msra.mxu0 %v851
        %869 = vmatprep.subr.bf16.mxu0 0
        %870 = vmatpush1.bf16.msra.mxu0 %v852
        %871 = vmatprep.subr.bf16.mxu0 0
        %872 = vmatpush1.bf16.msra.mxu0 %v853
        %873 = vmatprep.subr.bf16.mxu0 0
        %874 = vmatpush1.bf16.msra.mxu0 %v854
        %875 = vmatprep.subr.bf16.mxu0 0
        %876 = vmatpush1.bf16.msra.mxu0 %v855
        %877 = vmatprep.subr.bf16.mxu0 0
        %878 = vmatpush1.bf16.msra.mxu0 %v856
        %879 = vmatprep.subr.bf16.mxu0 0
        %880 = vmatpush1.bf16.msra.mxu0 %v857
        %881 = vmatprep.subr.bf16.mxu0 0
        %882 = vmatpush1.bf16.msra.mxu0 %v858
        %883 = vmatprep.subr.bf16.mxu0 0
        %884 = vmatpush1.bf16.msra.mxu0 0
        %885 = vmatprep.subr.bf16.mxu0 0
        %886 = vmatpush1.bf16.msra.mxu0 0
        %887 = vmatprep.subr.bf16.mxu0 0
        %888 = vmatpush1.bf16.msra.mxu0 0
        %889 = vmatprep.subr.bf16.mxu0 0
        %890 = vmatpush1.bf16.msra.mxu0 0
        %891 = vmatprep.subr.bf16.mxu0 0
        %892 = vmatpush1.bf16.msra.mxu0 0
        %893 = vmatprep.subr.bf16.mxu0 0
        %894 = vmatpush1.bf16.msra.mxu0 0
        %895 = vmatprep.subr.bf16.mxu0 0
        %896 = vmatpush1.bf16.msra.mxu0 0
        %897 = vmatprep.subr.bf16.mxu0 0
        %898 = vmatpush1.bf16.msra.mxu0 0
        %899 = vmatprep.mubr.bf16.mxu0 0
        %900 = vmatmul.mubr.bf16.gmra.mrb[0].mxu0 %v815
        %v901 = vpop.f32.mrb[0].mxu0
        %v902 = vadd.f32 0.0, %v901
        %v903 = vpop.f32.mrb[0].mxu0
        %v904 = vpop.f32.mrb[0].mxu0
        %v905 = vadd.f32 0.0, %v904
        %v906 = vpop.f32.mrb[0].mxu0
        %907 = vmatprep.mubr.bf16.mxu0 0
        %908 = vmatmul.mubr.bf16.gmra.mrb[0].mxu0 %v816
        %v909 = vpop.f32.mrb[0].mxu0
        %v910 = vadd.f32 0.0, %v909
        %v911 = vpop.f32.mrb[0].mxu0
        %v912 = vpop.f32.mrb[0].mxu0
        %v913 = vadd.f32 0.0, %v912
        %v914 = vpop.f32.mrb[0].mxu0
        %915 = vdwg.mxu0
        %v916 = vadd.f32 %v780, %v902
        %v917 = vadd.f32 %v781, %v905
        %v918 = vadd.f32 %v782, %v910
        %v919 = vadd.f32 %v783, %v913
        %s920 = smul.addr %s327, 4
        %s921 = scalar_lea.vmem %s323, %s920
        %v922 = vld [vmem:[%s921] sm:$0xf]
        %v923 = vld [vmem:[%s921 + $0x8] sm:$0xf]
        %v924 = vld [vmem:[%s921 + $0x10] sm:$0xf]
        %v925 = vld [vmem:[%s921 + $0x18] sm:$0xf]
        %s926 = scalar_lea.vmem %s4, 256
        %v927 = vld [vmem:[%s926] sm:$0xf]
        %v928 = vld [vmem:[%s926 + $0x4] sm:$0xf]
        %v929 = vld [vmem:[%s926 + $0x8] sm:$0xf]
        %v930 = vld [vmem:[%s926 + $0xc] sm:$0xf]
        %v931 = vld [vmem:[%s926 + $0x10] sm:$0xf]
        %v932 = vld [vmem:[%s926 + $0x14] sm:$0xf]
        %v933 = vld [vmem:[%s926 + $0x18] sm:$0xf]
        %v934 = vld [vmem:[%s926 + $0x1c] sm:$0xf]
        %v935 = vld [vmem:[%s926 + $0x20] sm:$0xf]
        %v936 = vld [vmem:[%s926 + $0x24] sm:$0xf]
        %v937 = vld [vmem:[%s926 + $0x28] sm:$0xf]
        %v938 = vld [vmem:[%s926 + $0x2c] sm:$0xf]
        %v939 = vld [vmem:[%s926 + $0x30] sm:$0xf]
        %v940 = vld [vmem:[%s926 + $0x34] sm:$0xf]
        %v941 = vld [vmem:[%s926 + $0x38] sm:$0xf]
        %v942 = vld [vmem:[%s926 + $0x3c] sm:$0xf]
        %v947 = vunpack.c.l.b16 %v922
        %v948 = vunpack.c.l.b16 %v923
        %v949 = vunpack.c.l.b16 %v924
        %v950 = vunpack.c.l.b16 %v925
        %v951 = vpack.c.b16 %v948, %v947
        %v952 = vpack.c.b16 %v950, %v949
        %v971 = vunpack.c.l.b16 %v927
        %v972 = vunpack.c.l.b16 %v928
        %v973 = vunpack.c.l.b16 %v929
        %v974 = vunpack.c.l.b16 %v930
        %v975 = vunpack.c.l.b16 %v931
        %v976 = vunpack.c.l.b16 %v932
        %v977 = vunpack.c.l.b16 %v933
        %v978 = vunpack.c.l.b16 %v934
        %v979 = vunpack.c.l.b16 %v935
        %v980 = vunpack.c.l.b16 %v936
        %v981 = vunpack.c.l.b16 %v937
        %v982 = vunpack.c.l.b16 %v938
        %v983 = vunpack.c.l.b16 %v939
        %v984 = vunpack.c.l.b16 %v940
        %v985 = vunpack.c.l.b16 %v941
        %v986 = vunpack.c.l.b16 %v942
        %v987 = vpack.c.b16 %v972, %v971
        %v988 = vpack.c.b16 %v974, %v973
        %v989 = vpack.c.b16 %v976, %v975
        %v990 = vpack.c.b16 %v978, %v977
        %v991 = vpack.c.b16 %v980, %v979
        %v992 = vpack.c.b16 %v982, %v981
        %v993 = vpack.c.b16 %v984, %v983
        %v994 = vpack.c.b16 %v986, %v985
        %1003 = vmatprep.subr.bf16.mxu0 0
        %1004 = vmatpush1.bf16.msra.mxu0 %v987
        %1005 = vmatprep.subr.bf16.mxu0 0
        %1006 = vmatpush1.bf16.msra.mxu0 %v988
        %1007 = vmatprep.subr.bf16.mxu0 0
        %1008 = vmatpush1.bf16.msra.mxu0 %v989
        %1009 = vmatprep.subr.bf16.mxu0 0
        %1010 = vmatpush1.bf16.msra.mxu0 %v990
        %1011 = vmatprep.subr.bf16.mxu0 0
        %1012 = vmatpush1.bf16.msra.mxu0 %v991
        %1013 = vmatprep.subr.bf16.mxu0 0
        %1014 = vmatpush1.bf16.msra.mxu0 %v992
        %1015 = vmatprep.subr.bf16.mxu0 0
        %1016 = vmatpush1.bf16.msra.mxu0 %v993
        %1017 = vmatprep.subr.bf16.mxu0 0
        %1018 = vmatpush1.bf16.msra.mxu0 %v994
        %1019 = vmatprep.subr.bf16.mxu0 0
        %1020 = vmatpush1.bf16.msra.mxu0 0
        %1021 = vmatprep.subr.bf16.mxu0 0
        %1022 = vmatpush1.bf16.msra.mxu0 0
        %1023 = vmatprep.subr.bf16.mxu0 0
        %1024 = vmatpush1.bf16.msra.mxu0 0
        %1025 = vmatprep.subr.bf16.mxu0 0
        %1026 = vmatpush1.bf16.msra.mxu0 0
        %1027 = vmatprep.subr.bf16.mxu0 0
        %1028 = vmatpush1.bf16.msra.mxu0 0
        %1029 = vmatprep.subr.bf16.mxu0 0
        %1030 = vmatpush1.bf16.msra.mxu0 0
        %1031 = vmatprep.subr.bf16.mxu0 0
        %1032 = vmatpush1.bf16.msra.mxu0 0
        %1033 = vmatprep.subr.bf16.mxu0 0
        %1034 = vmatpush1.bf16.msra.mxu0 0
        %1035 = vmatprep.mubr.bf16.mxu0 0
        %1036 = vmatmul.mubr.bf16.gmra.mrb[0].mxu0 %v951
        %v1037 = vpop.f32.mrb[0].mxu0
        %v1038 = vadd.f32 0.0, %v1037
        %v1039 = vpop.f32.mrb[0].mxu0
        %v1040 = vpop.f32.mrb[0].mxu0
        %v1041 = vadd.f32 0.0, %v1040
        %v1042 = vpop.f32.mrb[0].mxu0
        %1043 = vmatprep.mubr.bf16.mxu0 0
        %1044 = vmatmul.mubr.bf16.gmra.mrb[0].mxu0 %v952
        %v1045 = vpop.f32.mrb[0].mxu0
        %v1046 = vadd.f32 0.0, %v1045
        %v1047 = vpop.f32.mrb[0].mxu0
        %v1048 = vpop.f32.mrb[0].mxu0
        %v1049 = vadd.f32 0.0, %v1048
        %v1050 = vpop.f32.mrb[0].mxu0
        %1051 = vdwg.mxu0
        %v1052 = vadd.f32 %v916, %v1038
        %v1053 = vadd.f32 %v917, %v1041
        %v1054 = vadd.f32 %v918, %v1046
        %v1055 = vadd.f32 %v919, %v1049
        %v1056 = vld [vmem:[%s785] sm:$0xf]
        %v1057 = vld [vmem:[%s785 + $0x4] sm:$0x1]
        %v1058 = vld [vmem:[%s785 + $0x8] sm:$0xf]
        %v1059 = vld [vmem:[%s785 + $0xc] sm:$0x1]
        %v1060 = vld [vmem:[%s785 + $0x10] sm:$0xf]
        %v1061 = vld [vmem:[%s785 + $0x14] sm:$0x1]
        %v1062 = vld [vmem:[%s785 + $0x18] sm:$0xf]
        %v1063 = vld [vmem:[%s785 + $0x1c] sm:$0x1]
        %v1065 = vshrl.u32 %v1056, 16
        %v1067 = vrot.slane %v1065, 4
        %v1068 = vshll.u32 %v1056, 16
        %v1070 = vrot.slane %v1068, 5
        %v1071 = vor.u32 %v1067, %v1070
        %v1072 = vrot.slane %v1071, 4
        %v1074 = vshll.u32 %v1057, 16
        %v1076 = vrot.slane %v1074, 5
        %v1077 = vsel %vm601, %v1072, %v1076
        %v1079 = vshrl.u32 %v1058, 16
        %v1081 = vrot.slane %v1079, 4
        %v1082 = vshll.u32 %v1058, 16
        %v1084 = vrot.slane %v1082, 5
        %v1085 = vor.u32 %v1081, %v1084
        %v1086 = vrot.slane %v1085, 4
        %v1088 = vshll.u32 %v1059, 16
        %v1090 = vrot.slane %v1088, 5
        %v1091 = vsel %vm601, %v1086, %v1090
        %v1093 = vshrl.u32 %v1060, 16
        %v1095 = vrot.slane %v1093, 4
        %v1096 = vshll.u32 %v1060, 16
        %v1098 = vrot.slane %v1096, 5
        %v1099 = vor.u32 %v1095, %v1098
        %v1100 = vrot.slane %v1099, 4
        %v1102 = vshll.u32 %v1061, 16
        %v1104 = vrot.slane %v1102, 5
        %v1105 = vsel %vm601, %v1100, %v1104
        %v1107 = vshrl.u32 %v1062, 16
        %v1109 = vrot.slane %v1107, 4
        %v1110 = vshll.u32 %v1062, 16
        %v1112 = vrot.slane %v1110, 5
        %v1113 = vor.u32 %v1109, %v1112
        %v1114 = vrot.slane %v1113, 4
        %v1116 = vshll.u32 %v1063, 16
        %v1118 = vrot.slane %v1116, 5
        %v1119 = vsel %vm601, %v1114, %v1118
        %s1120 = scalar_lea.vmem %s4, 320
        %v1121 = vld [vmem:[%s1120] sm:$0xf]
        %v1122 = vld [vmem:[%s1120 + $0x4] sm:$0xf]
        %v1123 = vld [vmem:[%s1120 + $0x8] sm:$0xf]
        %v1124 = vld [vmem:[%s1120 + $0xc] sm:$0xf]
        %v1125 = vld [vmem:[%s1120 + $0x10] sm:$0xf]
        %v1126 = vld [vmem:[%s1120 + $0x14] sm:$0xf]
        %v1127 = vld [vmem:[%s1120 + $0x18] sm:$0xf]
        %v1128 = vld [vmem:[%s1120 + $0x1c] sm:$0xf]
        %v1129 = vld [vmem:[%s1120 + $0x20] sm:$0xf]
        %v1130 = vld [vmem:[%s1120 + $0x24] sm:$0xf]
        %v1131 = vld [vmem:[%s1120 + $0x28] sm:$0xf]
        %v1132 = vld [vmem:[%s1120 + $0x2c] sm:$0xf]
        %v1133 = vld [vmem:[%s1120 + $0x30] sm:$0xf]
        %v1134 = vld [vmem:[%s1120 + $0x34] sm:$0xf]
        %v1135 = vld [vmem:[%s1120 + $0x38] sm:$0xf]
        %v1136 = vld [vmem:[%s1120 + $0x3c] sm:$0xf]
        %v1137 = vunpack.c.l.b16 %v1077
        %v1138 = vunpack.c.l.b16 %v1091
        %v1139 = vunpack.c.l.b16 %v1105
        %v1140 = vunpack.c.l.b16 %v1119
        %v1141 = vpack.c.b16 %v1138, %v1137
        %v1142 = vpack.c.b16 %v1140, %v1139
        %v1161 = vunpack.c.l.b16 %v1121
        %v1162 = vunpack.c.l.b16 %v1122
        %v1163 = vunpack.c.l.b16 %v1123
        %v1164 = vunpack.c.l.b16 %v1124
        %v1165 = vunpack.c.l.b16 %v1125
        %v1166 = vunpack.c.l.b16 %v1126
        %v1167 = vunpack.c.l.b16 %v1127
        %v1168 = vunpack.c.l.b16 %v1128
        %v1169 = vunpack.c.l.b16 %v1129
        %v1170 = vunpack.c.l.b16 %v1130
        %v1171 = vunpack.c.l.b16 %v1131
        %v1172 = vunpack.c.l.b16 %v1132
        %v1173 = vunpack.c.l.b16 %v1133
        %v1174 = vunpack.c.l.b16 %v1134
        %v1175 = vunpack.c.l.b16 %v1135
        %v1176 = vunpack.c.l.b16 %v1136
        %v1177 = vpack.c.b16 %v1162, %v1161
        %v1178 = vpack.c.b16 %v1164, %v1163
        %v1179 = vpack.c.b16 %v1166, %v1165
        %v1180 = vpack.c.b16 %v1168, %v1167
        %v1181 = vpack.c.b16 %v1170, %v1169
        %v1182 = vpack.c.b16 %v1172, %v1171
        %v1183 = vpack.c.b16 %v1174, %v1173
        %v1184 = vpack.c.b16 %v1176, %v1175
        %1193 = vmatprep.subr.bf16.mxu0 0
        %1194 = vmatpush1.bf16.msra.mxu0 %v1177
        %1195 = vmatprep.subr.bf16.mxu0 0
        %1196 = vmatpush1.bf16.msra.mxu0 %v1178
        %1197 = vmatprep.subr.bf16.mxu0 0
        %1198 = vmatpush1.bf16.msra.mxu0 %v1179
        %1199 = vmatprep.subr.bf16.mxu0 0
        %1200 = vmatpush1.bf16.msra.mxu0 %v1180
        %1201 = vmatprep.subr.bf16.mxu0 0
        %1202 = vmatpush1.bf16.msra.mxu0 %v1181
        %1203 = vmatprep.subr.bf16.mxu0 0
        %1204 = vmatpush1.bf16.msra.mxu0 %v1182
        %1205 = vmatprep.subr.bf16.mxu0 0
        %1206 = vmatpush1.bf16.msra.mxu0 %v1183
        %1207 = vmatprep.subr.bf16.mxu0 0
        %1208 = vmatpush1.bf16.msra.mxu0 %v1184
        %1209 = vmatprep.subr.bf16.mxu0 0
        %1210 = vmatpush1.bf16.msra.mxu0 0
        %1211 = vmatprep.subr.bf16.mxu0 0
        %1212 = vmatpush1.bf16.msra.mxu0 0
        %1213 = vmatprep.subr.bf16.mxu0 0
        %1214 = vmatpush1.bf16.msra.mxu0 0
        %1215 = vmatprep.subr.bf16.mxu0 0
        %1216 = vmatpush1.bf16.msra.mxu0 0
        %1217 = vmatprep.subr.bf16.mxu0 0
        %1218 = vmatpush1.bf16.msra.mxu0 0
        %1219 = vmatprep.subr.bf16.mxu0 0
        %1220 = vmatpush1.bf16.msra.mxu0 0
        %1221 = vmatprep.subr.bf16.mxu0 0
        %1222 = vmatpush1.bf16.msra.mxu0 0
        %1223 = vmatprep.subr.bf16.mxu0 0
        %1224 = vmatpush1.bf16.msra.mxu0 0
        %1225 = vmatprep.mubr.bf16.mxu0 0
        %1226 = vmatmul.mubr.bf16.gmra.mrb[0].mxu0 %v1141
        %v1227 = vpop.f32.mrb[0].mxu0
        %v1228 = vadd.f32 0.0, %v1227
        %v1229 = vpop.f32.mrb[0].mxu0
        %v1230 = vpop.f32.mrb[0].mxu0
        %v1231 = vadd.f32 0.0, %v1230
        %v1232 = vpop.f32.mrb[0].mxu0
        %1233 = vmatprep.mubr.bf16.mxu0 0
        %1234 = vmatmul.mubr.bf16.gmra.mrb[0].mxu0 %v1142
        %v1235 = vpop.f32.mrb[0].mxu0
        %v1236 = vadd.f32 0.0, %v1235
        %v1237 = vpop.f32.mrb[0].mxu0
        %v1238 = vpop.f32.mrb[0].mxu0
        %v1239 = vadd.f32 0.0, %v1238
        %v1240 = vpop.f32.mrb[0].mxu0
        %1241 = vdwg.mxu0
        %v1242 = vadd.f32 %v1052, %v1228
        %v1243 = vadd.f32 %v1053, %v1231
        %v1244 = vadd.f32 %v1054, %v1236
        %v1245 = vadd.f32 %v1055, %v1239
        %s1246 = sadd.s32 %s326, 1
        %s1247 = smul.u32 %s1246, 2
        %s1248 = smul.addr %s1247, 4
        %s1249 = scalar_lea.vmem %s308, %s1248
        %v1250 = vld [vmem:[%s1249] sm:$0xf]
        %v1251 = vld [vmem:[%s1249 + $0x8] sm:$0xf]
        %v1252 = vld [vmem:[%s1249 + $0x10] sm:$0xf]
        %v1253 = vld [vmem:[%s1249 + $0x18] sm:$0xf]
        %s1254 = scalar_lea.vmem %s4, 384
        %v1255 = vld [vmem:[%s1254] sm:$0xf]
        %v1256 = vld [vmem:[%s1254 + $0x4] sm:$0xf]
        %v1257 = vld [vmem:[%s1254 + $0x8] sm:$0xf]
        %v1258 = vld [vmem:[%s1254 + $0xc] sm:$0xf]
        %v1259 = vld [vmem:[%s1254 + $0x10] sm:$0xf]
        %v1260 = vld [vmem:[%s1254 + $0x14] sm:$0xf]
        %v1261 = vld [vmem:[%s1254 + $0x18] sm:$0xf]
        %v1262 = vld [vmem:[%s1254 + $0x1c] sm:$0xf]
        %v1263 = vld [vmem:[%s1254 + $0x20] sm:$0xf]
        %v1264 = vld [vmem:[%s1254 + $0x24] sm:$0xf]
        %v1265 = vld [vmem:[%s1254 + $0x28] sm:$0xf]
        %v1266 = vld [vmem:[%s1254 + $0x2c] sm:$0xf]
        %v1267 = vld [vmem:[%s1254 + $0x30] sm:$0xf]
        %v1268 = vld [vmem:[%s1254 + $0x34] sm:$0xf]
        %v1269 = vld [vmem:[%s1254 + $0x38] sm:$0xf]
        %v1270 = vld [vmem:[%s1254 + $0x3c] sm:$0xf]
        %v1275 = vunpack.c.l.b16 %v1250
        %v1276 = vunpack.c.l.b16 %v1251
        %v1277 = vunpack.c.l.b16 %v1252
        %v1278 = vunpack.c.l.b16 %v1253
        %v1279 = vpack.c.b16 %v1276, %v1275
        %v1280 = vpack.c.b16 %v1278, %v1277
        %v1299 = vunpack.c.l.b16 %v1255
        %v1300 = vunpack.c.l.b16 %v1256
        %v1301 = vunpack.c.l.b16 %v1257
        %v1302 = vunpack.c.l.b16 %v1258
        %v1303 = vunpack.c.l.b16 %v1259
        %v1304 = vunpack.c.l.b16 %v1260
        %v1305 = vunpack.c.l.b16 %v1261
        %v1306 = vunpack.c.l.b16 %v1262
        %v1307 = vunpack.c.l.b16 %v1263
        %v1308 = vunpack.c.l.b16 %v1264
        %v1309 = vunpack.c.l.b16 %v1265
        %v1310 = vunpack.c.l.b16 %v1266
        %v1311 = vunpack.c.l.b16 %v1267
        %v1312 = vunpack.c.l.b16 %v1268
        %v1313 = vunpack.c.l.b16 %v1269
        %v1314 = vunpack.c.l.b16 %v1270
        %v1315 = vpack.c.b16 %v1300, %v1299
        %v1316 = vpack.c.b16 %v1302, %v1301
        %v1317 = vpack.c.b16 %v1304, %v1303
        %v1318 = vpack.c.b16 %v1306, %v1305
        %v1319 = vpack.c.b16 %v1308, %v1307
        %v1320 = vpack.c.b16 %v1310, %v1309
        %v1321 = vpack.c.b16 %v1312, %v1311
        %v1322 = vpack.c.b16 %v1314, %v1313
        %1331 = vmatprep.subr.bf16.mxu0 0
        %1332 = vmatpush1.bf16.msra.mxu0 %v1315
        %1333 = vmatprep.subr.bf16.mxu0 0
        %1334 = vmatpush1.bf16.msra.mxu0 %v1316
        %1335 = vmatprep.subr.bf16.mxu0 0
        %1336 = vmatpush1.bf16.msra.mxu0 %v1317
        %1337 = vmatprep.subr.bf16.mxu0 0
        %1338 = vmatpush1.bf16.msra.mxu0 %v1318
        %1339 = vmatprep.subr.bf16.mxu0 0
        %1340 = vmatpush1.bf16.msra.mxu0 %v1319
        %1341 = vmatprep.subr.bf16.mxu0 0
        %1342 = vmatpush1.bf16.msra.mxu0 %v1320
        %1343 = vmatprep.subr.bf16.mxu0 0
        %1344 = vmatpush1.bf16.msra.mxu0 %v1321
        %1345 = vmatprep.subr.bf16.mxu0 0
        %1346 = vmatpush1.bf16.msra.mxu0 %v1322
        %1347 = vmatprep.subr.bf16.mxu0 0
        %1348 = vmatpush1.bf16.msra.mxu0 0
        %1349 = vmatprep.subr.bf16.mxu0 0
        %1350 = vmatpush1.bf16.msra.mxu0 0
        %1351 = vmatprep.subr.bf16.mxu0 0
        %1352 = vmatpush1.bf16.msra.mxu0 0
        %1353 = vmatprep.subr.bf16.mxu0 0
        %1354 = vmatpush1.bf16.msra.mxu0 0
        %1355 = vmatprep.subr.bf16.mxu0 0
        %1356 = vmatpush1.bf16.msra.mxu0 0
        %1357 = vmatprep.subr.bf16.mxu0 0
        %1358 = vmatpush1.bf16.msra.mxu0 0
        %1359 = vmatprep.subr.bf16.mxu0 0
        %1360 = vmatpush1.bf16.msra.mxu0 0
        %1361 = vmatprep.subr.bf16.mxu0 0
        %1362 = vmatpush1.bf16.msra.mxu0 0
        %1363 = vmatprep.mubr.bf16.mxu0 0
        %1364 = vmatmul.mubr.bf16.gmra.mrb[0].mxu0 %v1279
        %v1365 = vpop.f32.mrb[0].mxu0
        %v1366 = vadd.f32 0.0, %v1365
        %v1367 = vpop.f32.mrb[0].mxu0
        %v1368 = vpop.f32.mrb[0].mxu0
        %v1369 = vadd.f32 0.0, %v1368
        %v1370 = vpop.f32.mrb[0].mxu0
        %1371 = vmatprep.mubr.bf16.mxu0 0
        %1372 = vmatmul.mubr.bf16.gmra.mrb[0].mxu0 %v1280
        %v1373 = vpop.f32.mrb[0].mxu0
        %v1374 = vadd.f32 0.0, %v1373
        %v1375 = vpop.f32.mrb[0].mxu0
        %v1376 = vpop.f32.mrb[0].mxu0
        %v1377 = vadd.f32 0.0, %v1376
        %v1378 = vpop.f32.mrb[0].mxu0
        %1379 = vdwg.mxu0
        %v1380 = vadd.f32 %v1242, %v1366
        %v1381 = vadd.f32 %v1243, %v1369
        %v1382 = vadd.f32 %v1244, %v1374
        %v1383 = vadd.f32 %v1245, %v1377
        %s1384 = smul.addr %s1247, 4
        %s1385 = scalar_lea.vmem %s313, %s1384
        %v1386 = vld [vmem:[%s1385] sm:$0xf]
        %v1387 = vld [vmem:[%s1385 + $0x8] sm:$0xf]
        %v1388 = vld [vmem:[%s1385 + $0x10] sm:$0xf]
        %v1389 = vld [vmem:[%s1385 + $0x18] sm:$0xf]
        %s1390 = scalar_lea.vmem %s4, 448
        %v1391 = vld [vmem:[%s1390] sm:$0xf]
        %v1392 = vld [vmem:[%s1390 + $0x4] sm:$0xf]
        %v1393 = vld [vmem:[%s1390 + $0x8] sm:$0xf]
        %v1394 = vld [vmem:[%s1390 + $0xc] sm:$0xf]
        %v1395 = vld [vmem:[%s1390 + $0x10] sm:$0xf]
        %v1396 = vld [vmem:[%s1390 + $0x14] sm:$0xf]
        %v1397 = vld [vmem:[%s1390 + $0x18] sm:$0xf]
        %v1398 = vld [vmem:[%s1390 + $0x1c] sm:$0xf]
        %v1399 = vld [vmem:[%s1390 + $0x20] sm:$0xf]
        %v1400 = vld [vmem:[%s1390 + $0x24] sm:$0xf]
        %v1401 = vld [vmem:[%s1390 + $0x28] sm:$0xf]
        %v1402 = vld [vmem:[%s1390 + $0x2c] sm:$0xf]
        %v1403 = vld [vmem:[%s1390 + $0x30] sm:$0xf]
        %v1404 = vld [vmem:[%s1390 + $0x34] sm:$0xf]
        %v1405 = vld [vmem:[%s1390 + $0x38] sm:$0xf]
        %v1406 = vld [vmem:[%s1390 + $0x3c] sm:$0xf]
        %v1411 = vunpack.c.l.b16 %v1386
        %v1412 = vunpack.c.l.b16 %v1387
        %v1413 = vunpack.c.l.b16 %v1388
        %v1414 = vunpack.c.l.b16 %v1389
        %v1415 = vpack.c.b16 %v1412, %v1411
        %v1416 = vpack.c.b16 %v1414, %v1413
        %v1435 = vunpack.c.l.b16 %v1391
        %v1436 = vunpack.c.l.b16 %v1392
        %v1437 = vunpack.c.l.b16 %v1393
        %v1438 = vunpack.c.l.b16 %v1394
        %v1439 = vunpack.c.l.b16 %v1395
        %v1440 = vunpack.c.l.b16 %v1396
        %v1441 = vunpack.c.l.b16 %v1397
        %v1442 = vunpack.c.l.b16 %v1398
        %v1443 = vunpack.c.l.b16 %v1399
        %v1444 = vunpack.c.l.b16 %v1400
        %v1445 = vunpack.c.l.b16 %v1401
        %v1446 = vunpack.c.l.b16 %v1402
        %v1447 = vunpack.c.l.b16 %v1403
        %v1448 = vunpack.c.l.b16 %v1404
        %v1449 = vunpack.c.l.b16 %v1405
        %v1450 = vunpack.c.l.b16 %v1406
        %v1451 = vpack.c.b16 %v1436, %v1435
        %v1452 = vpack.c.b16 %v1438, %v1437
        %v1453 = vpack.c.b16 %v1440, %v1439
        %v1454 = vpack.c.b16 %v1442, %v1441
        %v1455 = vpack.c.b16 %v1444, %v1443
        %v1456 = vpack.c.b16 %v1446, %v1445
        %v1457 = vpack.c.b16 %v1448, %v1447
        %v1458 = vpack.c.b16 %v1450, %v1449
        %1467 = vmatprep.subr.bf16.mxu0 0
        %1468 = vmatpush1.bf16.msra.mxu0 %v1451
        %1469 = vmatprep.subr.bf16.mxu0 0
        %1470 = vmatpush1.bf16.msra.mxu0 %v1452
        %1471 = vmatprep.subr.bf16.mxu0 0
        %1472 = vmatpush1.bf16.msra.mxu0 %v1453
        %1473 = vmatprep.subr.bf16.mxu0 0
        %1474 = vmatpush1.bf16.msra.mxu0 %v1454
        %1475 = vmatprep.subr.bf16.mxu0 0
        %1476 = vmatpush1.bf16.msra.mxu0 %v1455
        %1477 = vmatprep.subr.bf16.mxu0 0
        %1478 = vmatpush1.bf16.msra.mxu0 %v1456
        %1479 = vmatprep.subr.bf16.mxu0 0
        %1480 = vmatpush1.bf16.msra.mxu0 %v1457
        %1481 = vmatprep.subr.bf16.mxu0 0
        %1482 = vmatpush1.bf16.msra.mxu0 %v1458
        %1483 = vmatprep.subr.bf16.mxu0 0
        %1484 = vmatpush1.bf16.msra.mxu0 0
        %1485 = vmatprep.subr.bf16.mxu0 0
        %1486 = vmatpush1.bf16.msra.mxu0 0
        %1487 = vmatprep.subr.bf16.mxu0 0
        %1488 = vmatpush1.bf16.msra.mxu0 0
        %1489 = vmatprep.subr.bf16.mxu0 0
        %1490 = vmatpush1.bf16.msra.mxu0 0
        %1491 = vmatprep.subr.bf16.mxu0 0
        %1492 = vmatpush1.bf16.msra.mxu0 0
        %1493 = vmatprep.subr.bf16.mxu0 0
        %1494 = vmatpush1.bf16.msra.mxu0 0
        %1495 = vmatprep.subr.bf16.mxu0 0
        %1496 = vmatpush1.bf16.msra.mxu0 0
        %1497 = vmatprep.subr.bf16.mxu0 0
        %1498 = vmatpush1.bf16.msra.mxu0 0
        %1499 = vmatprep.mubr.bf16.mxu0 0
        %1500 = vmatmul.mubr.bf16.gmra.mrb[0].mxu0 %v1415
        %v1501 = vpop.f32.mrb[0].mxu0
        %v1502 = vadd.f32 0.0, %v1501
        %v1503 = vpop.f32.mrb[0].mxu0
        %v1504 = vpop.f32.mrb[0].mxu0
        %v1505 = vadd.f32 0.0, %v1504
        %v1506 = vpop.f32.mrb[0].mxu0
        %1507 = vmatprep.mubr.bf16.mxu0 0
        %1508 = vmatmul.mubr.bf16.gmra.mrb[0].mxu0 %v1416
        %v1509 = vpop.f32.mrb[0].mxu0
        %v1510 = vadd.f32 0.0, %v1509
        %v1511 = vpop.f32.mrb[0].mxu0
        %v1512 = vpop.f32.mrb[0].mxu0
        %v1513 = vadd.f32 0.0, %v1512
        %v1514 = vpop.f32.mrb[0].mxu0
        %1515 = vdwg.mxu0
        %v1516 = vadd.f32 %v1380, %v1502
        %v1517 = vadd.f32 %v1381, %v1505
        %v1518 = vadd.f32 %v1382, %v1510
        %v1519 = vadd.f32 %v1383, %v1513
        %v1520 = vld [vmem:[%s1249] sm:$0xf]
        %v1521 = vld [vmem:[%s1249 + $0x4] sm:$0x1]
        %v1522 = vld [vmem:[%s1249 + $0x8] sm:$0xf]
        %v1523 = vld [vmem:[%s1249 + $0xc] sm:$0x1]
        %v1524 = vld [vmem:[%s1249 + $0x10] sm:$0xf]
        %v1525 = vld [vmem:[%s1249 + $0x14] sm:$0x1]
        %v1526 = vld [vmem:[%s1249 + $0x18] sm:$0xf]
        %v1527 = vld [vmem:[%s1249 + $0x1c] sm:$0x1]
        %v1529 = vshrl.u32 %v1520, 16
        %v1531 = vrot.slane %v1529, 4
        %v1532 = vshll.u32 %v1520, 16
        %v1534 = vrot.slane %v1532, 5
        %v1535 = vor.u32 %v1531, %v1534
        %v1536 = vrot.slane %v1535, 4
        %v1538 = vshll.u32 %v1521, 16
        %v1540 = vrot.slane %v1538, 5
        %v1541 = vsel %vm601, %v1536, %v1540
        %v1543 = vshrl.u32 %v1522, 16
        %v1545 = vrot.slane %v1543, 4
        %v1546 = vshll.u32 %v1522, 16
        %v1548 = vrot.slane %v1546, 5
        %v1549 = vor.u32 %v1545, %v1548
        %v1550 = vrot.slane %v1549, 4
        %v1552 = vshll.u32 %v1523, 16
        %v1554 = vrot.slane %v1552, 5
        %v1555 = vsel %vm601, %v1550, %v1554
        %v1557 = vshrl.u32 %v1524, 16
        %v1559 = vrot.slane %v1557, 4
        %v1560 = vshll.u32 %v1524, 16
        %v1562 = vrot.slane %v1560, 5
        %v1563 = vor.u32 %v1559, %v1562
        %v1564 = vrot.slane %v1563, 4
        %v1566 = vshll.u32 %v1525, 16
        %v1568 = vrot.slane %v1566, 5
        %v1569 = vsel %vm601, %v1564, %v1568
        %v1571 = vshrl.u32 %v1526, 16
        %v1573 = vrot.slane %v1571, 4
        %v1574 = vshll.u32 %v1526, 16
        %v1576 = vrot.slane %v1574, 5
        %v1577 = vor.u32 %v1573, %v1576
        %v1578 = vrot.slane %v1577, 4
        %v1580 = vshll.u32 %v1527, 16
        %v1582 = vrot.slane %v1580, 5
        %v1583 = vsel %vm601, %v1578, %v1582
        %s1584 = scalar_lea.vmem %s4, 512
        %v1585 = vld [vmem:[%s1584] sm:$0xf]
        %v1586 = vld [vmem:[%s1584 + $0x4] sm:$0xf]
        %v1587 = vld [vmem:[%s1584 + $0x8] sm:$0xf]
        %v1588 = vld [vmem:[%s1584 + $0xc] sm:$0xf]
        %v1589 = vld [vmem:[%s1584 + $0x10] sm:$0xf]
        %v1590 = vld [vmem:[%s1584 + $0x14] sm:$0xf]
        %v1591 = vld [vmem:[%s1584 + $0x18] sm:$0xf]
        %v1592 = vld [vmem:[%s1584 + $0x1c] sm:$0xf]
        %v1593 = vld [vmem:[%s1584 + $0x20] sm:$0xf]
        %v1594 = vld [vmem:[%s1584 + $0x24] sm:$0xf]
        %v1595 = vld [vmem:[%s1584 + $0x28] sm:$0xf]
        %v1596 = vld [vmem:[%s1584 + $0x2c] sm:$0xf]
        %v1597 = vld [vmem:[%s1584 + $0x30] sm:$0xf]
        %v1598 = vld [vmem:[%s1584 + $0x34] sm:$0xf]
        %v1599 = vld [vmem:[%s1584 + $0x38] sm:$0xf]
        %v1600 = vld [vmem:[%s1584 + $0x3c] sm:$0xf]
        %v1601 = vunpack.c.l.b16 %v1541
        %v1602 = vunpack.c.l.b16 %v1555
        %v1603 = vunpack.c.l.b16 %v1569
        %v1604 = vunpack.c.l.b16 %v1583
        %v1605 = vpack.c.b16 %v1602, %v1601
        %v1606 = vpack.c.b16 %v1604, %v1603
        %v1625 = vunpack.c.l.b16 %v1585
        %v1626 = vunpack.c.l.b16 %v1586
        %v1627 = vunpack.c.l.b16 %v1587
        %v1628 = vunpack.c.l.b16 %v1588
        %v1629 = vunpack.c.l.b16 %v1589
        %v1630 = vunpack.c.l.b16 %v1590
        %v1631 = vunpack.c.l.b16 %v1591
        %v1632 = vunpack.c.l.b16 %v1592
        %v1633 = vunpack.c.l.b16 %v1593
        %v1634 = vunpack.c.l.b16 %v1594
        %v1635 = vunpack.c.l.b16 %v1595
        %v1636 = vunpack.c.l.b16 %v1596
        %v1637 = vunpack.c.l.b16 %v1597
        %v1638 = vunpack.c.l.b16 %v1598
        %v1639 = vunpack.c.l.b16 %v1599
        %v1640 = vunpack.c.l.b16 %v1600
        %v1641 = vpack.c.b16 %v1626, %v1625
        %v1642 = vpack.c.b16 %v1628, %v1627
        %v1643 = vpack.c.b16 %v1630, %v1629
        %v1644 = vpack.c.b16 %v1632, %v1631
        %v1645 = vpack.c.b16 %v1634, %v1633
        %v1646 = vpack.c.b16 %v1636, %v1635
        %v1647 = vpack.c.b16 %v1638, %v1637
        %v1648 = vpack.c.b16 %v1640, %v1639
        %1657 = vmatprep.subr.bf16.mxu0 0
        %1658 = vmatpush1.bf16.msra.mxu0 %v1641
        %1659 = vmatprep.subr.bf16.mxu0 0
        %1660 = vmatpush1.bf16.msra.mxu0 %v1642
        %1661 = vmatprep.subr.bf16.mxu0 0
        %1662 = vmatpush1.bf16.msra.mxu0 %v1643
        %1663 = vmatprep.subr.bf16.mxu0 0
        %1664 = vmatpush1.bf16.msra.mxu0 %v1644
        %1665 = vmatprep.subr.bf16.mxu0 0
        %1666 = vmatpush1.bf16.msra.mxu0 %v1645
        %1667 = vmatprep.subr.bf16.mxu0 0
        %1668 = vmatpush1.bf16.msra.mxu0 %v1646
        %1669 = vmatprep.subr.bf16.mxu0 0
        %1670 = vmatpush1.bf16.msra.mxu0 %v1647
        %1671 = vmatprep.subr.bf16.mxu0 0
        %1672 = vmatpush1.bf16.msra.mxu0 %v1648
        %1673 = vmatprep.subr.bf16.mxu0 0
        %1674 = vmatpush1.bf16.msra.mxu0 0
        %1675 = vmatprep.subr.bf16.mxu0 0
        %1676 = vmatpush1.bf16.msra.mxu0 0
        %1677 = vmatprep.subr.bf16.mxu0 0
        %1678 = vmatpush1.bf16.msra.mxu0 0
        %1679 = vmatprep.subr.bf16.mxu0 0
        %1680 = vmatpush1.bf16.msra.mxu0 0
        %1681 = vmatprep.subr.bf16.mxu0 0
        %1682 = vmatpush1.bf16.msra.mxu0 0
        %1683 = vmatprep.subr.bf16.mxu0 0
        %1684 = vmatpush1.bf16.msra.mxu0 0
        %1685 = vmatprep.subr.bf16.mxu0 0
        %1686 = vmatpush1.bf16.msra.mxu0 0
        %1687 = vmatprep.subr.bf16.mxu0 0
        %1688 = vmatpush1.bf16.msra.mxu0 0
        %1689 = vmatprep.mubr.bf16.mxu0 0
        %1690 = vmatmul.mubr.bf16.gmra.mrb[0].mxu0 %v1605
        %v1691 = vpop.f32.mrb[0].mxu0
        %v1692 = vadd.f32 0.0, %v1691
        %v1693 = vpop.f32.mrb[0].mxu0
        %v1694 = vpop.f32.mrb[0].mxu0
        %v1695 = vadd.f32 0.0, %v1694
        %v1696 = vpop.f32.mrb[0].mxu0
        %1697 = vmatprep.mubr.bf16.mxu0 0
        %1698 = vmatmul.mubr.bf16.gmra.mrb[0].mxu0 %v1606
        %v1699 = vpop.f32.mrb[0].mxu0
        %v1700 = vadd.f32 0.0, %v1699
        %v1701 = vpop.f32.mrb[0].mxu0
        %v1702 = vpop.f32.mrb[0].mxu0
        %v1703 = vadd.f32 0.0, %v1702
        %v1704 = vpop.f32.mrb[0].mxu0
        %1705 = vdwg.mxu0
        %v1706 = vadd.f32 %v1516, %v1692
        %v1707 = vadd.f32 %v1517, %v1695
        %v1708 = vadd.f32 %v1518, %v1700
        %v1709 = vadd.f32 %v1519, %v1703
        %v1710 = vld [vmem:[%s5] sm:$0x1]
        %v1712 = vlaneseq
        %v1713 = vshrl.u32 %v1712, 7
        %v1714 = vsub.s32 0, %v1713
        %v1715 = vrot.slane %v1710, %v1714
        %v1717 = vadd.f32 %v1706, %v1715
        %v1718 = vadd.f32 %v1707, %v1715
        %v1719 = vadd.f32 %v1708, %v1715
        %v1720 = vadd.f32 %v1709, %v1715
        %1721 = vst [vmem:[%s303] sm:$0xff] %v1717
        %1722 = vst [vmem:[%s303 + $0x8] sm:$0xff] %v1718
        %1723 = vst [vmem:[%s303 + $0x10] sm:$0xff] %v1719
        %1724 = vst [vmem:[%s303 + $0x18] sm:$0xff] %v1720
        %s1725 = sand.u32 %s188, 1
        %s1726 = scalar_lea.sflag [#allocation3], %s1725
        %s1727 = sand.u32 %s188, 1
        %s1728 = smul.addr %s1727, 32
        %s1729 = scalar_lea.vmem [#allocation2], %s1728
        // Predicated region
        $region45: #{tpu_custom_call.1} parent=43 // pred_check
          %p1730 = pneg %p198
        $region46: #{tpu_custom_call.1} parent=43 // pred_check_branch
          %1732 = sbr.rel (%p1730) target = $region48
        $region47: #{tpu_custom_call.1} parent=43 // pred_region
          %s1733 = smul.u32 4, %s25
          %s1735 = ssub.s32 512, 512
          %1736 = vsyncadd %s1726, %s1735
          %s1737 = smul.addr %s24, 8
          %s1738 = sadd.s32 %s1733, %s1737
          %s1739 = smul.addr %s1738, 128
          %s1740 = scalar_lea.hbm %s6, %s1739
          %s1741 = sshll.u32 %s1729, 4
          %s1742 = int_to_ptr.vmem [resolvable:$true] %s1741
          %1747 = dma.vmem_to_hbm [thread:$0]  %s1742, 512, %s1740, %s1726, 128, 128, 8
        $region48: #{tpu_custom_call.1} parent=43 // pred_fallthru
          _
      $region44: #{tpu_custom_call.1} parent=5 // pred_fallthru
        _
      %p1748 = scmp.le.s32.totalorder 2, %s15
      // Predicated region
      $region49: #{tpu_custom_call.1} parent=5 // pred_check
        %p1749 = pneg %p1748
      $region50: #{tpu_custom_call.1} parent=5 // pred_check_branch
        %1751 = sbr.rel (%p1749) target = $region52
      $region51: #{tpu_custom_call.1} parent=5 // pred_region
        %s1752 = ssub.s32 %s15, 2
        // Predicated region
        $region53: #{tpu_custom_call.1} parent=51 // pred_check
          %p1753 = pneg %p204
        $region54: #{tpu_custom_call.1} parent=51 // pred_check_branch
          %1755 = sbr.rel (%p1753) target = $region56
        $region55: #{tpu_custom_call.1} parent=51 // pred_region
          %s1756 = sand.u32 %s189, 1
          %s1757 = scalar_lea.sflag [#allocation3], %s1756
          %s1758 = sand.u32 %s189, 1
          %s1759 = smul.addr %s1758, 32
          %s1760 = scalar_lea.vmem [#allocation2], %s1759
          %1761 = dma.done %s1757, 512
        $region56: #{tpu_custom_call.1} parent=51 // pred_fallthru
          _
      $region52: #{tpu_custom_call.1} parent=5 // pred_fallthru
        _
    $region6: #{tpu_custom_call.1} parent=1 // loop_footer
      %s19 = sadd.s32 1, %s15
    $region7: #{tpu_custom_call.1} parent=1 // loop_footer_branch
      %14 = sbr.rel target = $region3
    $region8: #{tpu_custom_call.1} parent=1 // loop_exit
      _
    %1762 = vsyncpa [#allocation3], 1
    %s1763 = scalar_lea.sflag [#allocation3], 1
    %1764 = vsyncpa %s1763, 1

</llo_original>
